<compile_context>
chip_gen: v7x
topology: tpu7x:2x2x1
jax: 0.10.0
libtpu: 0.0.40
codegen_flags: <defaults>
</compile_context>

<pallas_src>
import functools

import jax
import jax.numpy as jnp
import numpy as np
from jax import lax
from jax.experimental import pallas as pl
from jax.experimental.pallas import tpu as pltpu


def _inception_kernel(x_ref, wh_ref, bh_ref, w3_ref, b3_ref, w5_ref, b5_ref,
                      bp_ref, cm_ref,
                      o_ref,
                      hb3, hb5, pb,
                      *, W, HW, Chid, Cout, B1, L1, B2, L2):
    f32 = jnp.float32
    x = x_ref[0]                                  # (Cin, HW), compute dtype

    # Column-validity masks (1, HW) for dx = j - 2 (W-direction padding).
    col = [cm_ref[j:j + 1, :] for j in range(5)]

    # ---- fused 1x1 heads: rows = [br1x1 | br3x3_1 | br5x5_1 | pool 1x1] ------
    heads = jnp.dot(wh_ref[...], x, preferred_element_type=f32) + bh_ref[...]
    br1 = heads[0:Chid]                           # (Chid, HW) f32
    h3 = heads[Chid:2 * Chid]
    h5 = heads[2 * Chid:3 * Chid]
    yp = heads[3 * Chid:3 * Chid + Cout]          # pool branch, pre-pool, no bias

    # ---- fill flattened line buffers; zero only the halo strips --------------
    bdt = hb3.dtype
    zh1 = jnp.zeros((Chid, B1), bdt)
    zh2 = jnp.zeros((Chid, B2), bdt)
    zp1 = jnp.zeros((Cout, B1), bdt)

    hb3[:, 0:B1] = zh1
    hb3[:, B1:B1 + HW] = h3.astype(bdt)
    hb3[:, B1 + HW:L1] = zh1

    hb5[:, 0:B2] = zh2
    hb5[:, B2:B2 + HW] = h5.astype(bdt)
    hb5[:, B2 + HW:L2] = zh2

    pb[:, 0:B1] = zp1
    pb[:, B1:B1 + HW] = yp.astype(bdt)
    pb[:, B1 + HW:L1] = zp1

    # Tap (ky, kx) of a padding-p conv starts at lane offset ky*W + kx in the
    # halo buffer (row padding via the zero halo, column padding via col masks;
    # the centre column mask is all-ones and skipped).
    def tapped_conv(buf, w_rows_ref, b_ref, ksz, moff):
        acc = None
        for ky in range(ksz):
            parts = []
            for kx in range(ksz):
                t = buf[:, ky * W + kx: ky * W + kx + HW]
                if moff + kx != 2:                          # skip all-ones mask
                    t = t * col[moff + kx]
                parts.append(t)
            slab = jnp.concatenate(parts, axis=0)           # (ksz*Chid, HW)
            part = jnp.dot(w_rows_ref[ky], slab, preferred_element_type=f32)
            acc = part if acc is None else acc + part
        return acc + b_ref[...]

    br5 = tapped_conv(hb5, w5_ref, b5_ref, 5, 0)            # 5x5 conv, pad=2
    br3 = tapped_conv(hb3, w3_ref, b3_ref, 3, 1)            # 3x3 conv, pad=1

    # ---- pool branch: 3x3 avg pool (count_include_pad) of (wp @ x), + bias ---
    psum = None
    for ky in range(3):
        for kx in range(3):
            t = pb[:, ky * W + kx: ky * W + kx + HW]
            if kx != 1:
                t = t * col[kx + 1]
            psum = t if psum is None else psum + t
    brp = psum.astype(f32) * (1.0 / 9.0) + bp_ref[...]

    # ---- single lane-dense NCHW store of all four branches --------------------
    o_ref[0] = jnp.concatenate([br1, br5, br3, brp], axis=0).astype(o_ref.dtype)


def inception_block(x_nchw, params, *, compute_dtype=jnp.float32):
    """Pallas implementation. x_nchw: (N, Cin, H, W) -> (N, Chid+3*Cout, H, W).

    compute_dtype: dtype fed to the MXU (accumulation is always f32).
    jnp.bfloat16 is recommended on v6e/v5e for 2x MXU throughput and half the
    HBM->VMEM bytes; default f32 matches the f32 reference closely.
    """
    (w1, b1, w31, b31, w32, b32, w51, b51, w52, b52, wp, bpb) = params
    N, Cin, H, W = x_nchw.shape
    Chid = w1.shape[0]
    Cout = w32.shape[0]
    Ctot = Chid + 3 * Cout
    HW = H * W
    cdt = compute_dtype

    # Channel-major, flattened spatial (lane-dense): (N, Cin, H*W).
    x = x_nchw.reshape(N, Cin, HW).astype(cdt)

    # Fused 1x1 head weights: rows = [w1 | w31 | w51 | wp].
    wh = jnp.concatenate([w1[:, :, 0, 0], w31[:, :, 0, 0], w51[:, :, 0, 0],
                          wp[:, :, 0, 0]], axis=0).astype(cdt)     # (3*Chid+Cout, Cin)
    # Pool rows get zero bias here; the pool-conv bias is added after pooling
    # (count_include_pad zero padding does not commute with a pre-pool bias).
    bh = jnp.concatenate([b1, b31, b51, jnp.zeros((Cout,), jnp.float32)]
                         )[:, None].astype(jnp.float32)            # (3*Chid+Cout, 1)

    # Spatial conv weights grouped per kernel row: (KH, Cout, KW*Chid) with
    # element [ky, o, kx*Chid + c] = w[o, c, ky, kx]  (matches slab concat order).
    w3r = jnp.transpose(w32, (2, 0, 3, 1)).reshape(3, Cout, 3 * Chid).astype(cdt)
    w5r = jnp.transpose(w52, (2, 0, 3, 1)).reshape(5, Cout, 5 * Chid).astype(cdt)
    b3 = b32[:, None].astype(jnp.float32)
    b5 = b52[:, None].astype(jnp.float32)
    bp = bpb[:, None].astype(jnp.float32)

    # Column-validity masks for dx = j - 2, j in [0, 5); rows 1..3 serve dx=-1..1.
    xs = np.arange(W)
    cmask_np = np.stack(
        [np.tile(((xs + (j - 2) >= 0) & (xs + (j - 2) < W)).astype(np.float32), H)
         for j in range(5)])                                       # (5, HW)
    cmask = jnp.asarray(cmask_np).astype(cdt)

    # Flattened halo-buffer geometry: interior at [Bp, Bp+HW), zeros elsewhere.
    B1, L1 = W + 1, HW + 2 * (W + 1)          # pad=1 buffers (3x3 conv, pool)
    B2, L2 = 2 * W + 2, HW + 2 * (2 * W + 2)  # pad=2 buffer  (5x5 conv)

    kernel = functools.partial(_inception_kernel, W=W, HW=HW, Chid=Chid,
                               Cout=Cout, B1=B1, L1=L1, B2=B2, L2=L2)

    def full_spec(a):
        nd = a.ndim
        return pl.BlockSpec(a.shape, lambda n, _nd=nd: (0,) * _nd)

    out3 = pl.pallas_call(
        kernel,
        out_shape=jax.ShapeDtypeStruct((N, Ctot, HW), jnp.float32),
        grid_spec=pltpu.PrefetchScalarGridSpec(
            num_scalar_prefetch=0,
            grid=(N,),
            in_specs=[
                pl.BlockSpec((1, Cin, HW), lambda n: (n, 0, 0)),
                full_spec(wh), full_spec(bh),
                full_spec(w3r), full_spec(b3),
                full_spec(w5r), full_spec(b5),
                full_spec(bp),
                full_spec(cmask),
            ],
            out_specs=pl.BlockSpec((1, Ctot, HW), lambda n: (n, 0, 0)),
            scratch_shapes=[
                pltpu.VMEM((Chid, L1), cdt),   # 3x3 hidden line buffer (pad 1)
                pltpu.VMEM((Chid, L2), cdt),   # 5x5 hidden line buffer (pad 2)
                pltpu.VMEM((Cout, L1), cdt),   # pool-branch line buffer (pad 1)
            ],
        ),
        compiler_params=pltpu.CompilerParams(
            dimension_semantics=("parallel",)),
    )(x, wh, bh, w3r, b3, w5r, b5, bp, cmask)

    return out3.reshape(N, Ctot, H, W)


def reference(x, params):
    """Pure-JAX reference matching the PyTorch module semantics (NCHW)."""
    (w1, b1, w31, b31, w32, b32, w51, b51, w52, b52, wp, bpb) = params

    def conv(inp, w, b, pad):
        y = lax.conv_general_dilated(inp, w, (1, 1), [(pad, pad), (pad, pad)],
                                     dimension_numbers=('NCHW', 'OIHW', 'NCHW'),
                                     precision=lax.Precision.HIGHEST)
        return y + b[None, :, None, None]

    br1 = conv(x, w1, b1, 0)
    h3 = conv(x, w31, b31, 0)
    br3 = conv(h3, w32, b32, 1)
    h5 = conv(x, w51, b51, 0)
    br5 = conv(h5, w52, b52, 2)
    pooled = lax.reduce_window(x, 0.0, lax.add, (1, 1, 3, 3), (1, 1, 1, 1),
                               [(0, 0), (0, 0), (1, 1), (1, 1)]) / 9.0
    brp = conv(pooled, wp, bpb, 0)
    return jnp.concatenate([br1, br5, br3, brp], axis=1)


if __name__ == "__main__":
    key = jax.random.PRNGKey(0)
    N, Cin, H, W = 2, 4, 16, 16
    Chid, Cout = 8, 8

    ks = jax.random.split(key, 13)

    def rnd(k, shape):
        return jax.random.normal(k, shape, jnp.float32) * 0.1

    x = rnd(ks[0], (N, Cin, H, W))
    params = (
        rnd(ks[1], (Chid, Cin, 1, 1)),  rnd(ks[2], (Chid,)),    # branch1x1_1
        rnd(ks[3], (Chid, Cin, 1, 1)),  rnd(ks[4], (Chid,)),    # branch3x3_1
        rnd(ks[5], (Cout, Chid, 3, 3)), rnd(ks[6], (Cout,)),    # branch3x3_2
        rnd(ks[7], (Chid, Cin, 1, 1)),  rnd(ks[8], (Chid,)),    # branch5x5_1
        rnd(ks[9], (Cout, Chid, 5, 5)), rnd(ks[10], (Cout,)),   # branch5x5_2
        rnd(ks[11], (Cout, Cin, 1, 1)), rnd(ks[12], (Cout,)),   # branch_pool
    )

    out = jax.jit(inception_block)(x, params)
    out = jax.block_until_ready(out)

    ref = reference(x, params)
    np.testing.assert_allclose(np.asarray(out), np.asarray(ref),
                               atol=5e-3, rtol=5e-3)
    print("KERNEL_OK")
</pallas_src>

<mosaic_0001>
module attributes {stable_mosaic.version = 11 : i64} {
  func.func @_inception_kernel(%arg0: i32, %arg1: memref<1x4x256xf32, #tpu.memory_space<vmem>>, %arg2: memref<32x4xf32, #tpu.memory_space<vmem>>, %arg3: memref<32x1xf32, #tpu.memory_space<vmem>>, %arg4: memref<3x8x24xf32, #tpu.memory_space<vmem>>, %arg5: memref<8x1xf32, #tpu.memory_space<vmem>>, %arg6: memref<5x8x40xf32, #tpu.memory_space<vmem>>, %arg7: memref<8x1xf32, #tpu.memory_space<vmem>>, %arg8: memref<8x1xf32, #tpu.memory_space<vmem>>, %arg9: memref<5x256xf32, #tpu.memory_space<vmem>>, %arg10: memref<1x32x256xf32, #tpu.memory_space<vmem>>, %arg11: memref<8x290xf32, #tpu.memory_space<vmem>>, %arg12: memref<8x324xf32, #tpu.memory_space<vmem>>, %arg13: memref<8x290xf32, #tpu.memory_space<vmem>>) attributes {dimension_semantics = [#tpu.dimension_semantics<parallel>], iteration_bounds = array<i64: 2>, scalar_prefetch = 0 : i64, scratch_operands = 3 : i64, tpu.core_type = #tpu.core_type<tc>, window_params = [{transform_indices = @transform_0, window_bounds = array<i64: 1, 4, 256>}, {pipeline_mode = #tpu.pipeline_mode<synchronous>, transform_indices = @transform_1, window_bounds = array<i64: 32, 4>}, {pipeline_mode = #tpu.pipeline_mode<synchronous>, transform_indices = @transform_2, window_bounds = array<i64: 32, 1>}, {pipeline_mode = #tpu.pipeline_mode<synchronous>, transform_indices = @transform_3, window_bounds = array<i64: 3, 8, 24>}, {pipeline_mode = #tpu.pipeline_mode<synchronous>, transform_indices = @transform_4, window_bounds = array<i64: 8, 1>}, {pipeline_mode = #tpu.pipeline_mode<synchronous>, transform_indices = @transform_5, window_bounds = array<i64: 5, 8, 40>}, {pipeline_mode = #tpu.pipeline_mode<synchronous>, transform_indices = @transform_6, window_bounds = array<i64: 8, 1>}, {pipeline_mode = #tpu.pipeline_mode<synchronous>, transform_indices = @transform_7, window_bounds = array<i64: 8, 1>}, {pipeline_mode = #tpu.pipeline_mode<synchronous>, transform_indices = @transform_8, window_bounds = array<i64: 5, 256>}, {transform_indices = @transform_9, window_bounds = array<i64: 1, 32, 256>}]} {
    %c0 = arith.constant 0 : index
    %c0_0 = arith.constant 0 : index
    %c0_1 = arith.constant 0 : index
    %0 = vector.load %arg1[%c0, %c0_0, %c0_1] : memref<1x4x256xf32, #tpu.memory_space<vmem>>, vector<1x4x256xf32>
    %1 = vector.shape_cast %0 : vector<1x4x256xf32> to vector<4x256xf32>
    %c0_2 = arith.constant 0 : index
    %c0_3 = arith.constant 0 : index
    %2 = vector.load %arg9[%c0_2, %c0_3] : memref<5x256xf32, #tpu.memory_space<vmem>>, vector<1x256xf32>
    %c1 = arith.constant 1 : index
    %c0_4 = arith.constant 0 : index
    %3 = vector.load %arg9[%c1, %c0_4] : memref<5x256xf32, #tpu.memory_space<vmem>>, vector<1x256xf32>
    %c3 = arith.constant 3 : index
    %c0_5 = arith.constant 0 : index
    %4 = vector.load %arg9[%c3, %c0_5] : memref<5x256xf32, #tpu.memory_space<vmem>>, vector<1x256xf32>
    %c4 = arith.constant 4 : index
    %c0_6 = arith.constant 0 : index
    %5 = vector.load %arg9[%c4, %c0_6] : memref<5x256xf32, #tpu.memory_space<vmem>>, vector<1x256xf32>
    %c0_7 = arith.constant 0 : index
    %c0_8 = arith.constant 0 : index
    %6 = vector.load %arg2[%c0_7, %c0_8] : memref<32x4xf32, #tpu.memory_space<vmem>>, vector<32x4xf32>
    %cst = arith.constant dense<0.000000e+00> : vector<32x256xf32>
    %7 = tpu.matmul %6, %1, %cst {dimension_numbers = #tpu.dot_dimension_numbers<[1], [0], [0], [1], [0, 0, 1, 1], [], []>} : vector<32x4xf32>, vector<4x256xf32>, vector<32x256xf32> -> vector<32x256xf32>
    %c0_9 = arith.constant 0 : index
    %c0_10 = arith.constant 0 : index
    %8 = vector.load %arg3[%c0_9, %c0_10] : memref<32x1xf32, #tpu.memory_space<vmem>>, vector<32x1xf32>
    %9 = vector.broadcast %8 : vector<32x1xf32> to vector<32x256xf32>
    %10 = arith.addf %7, %9 : vector<32x256xf32>
    %11 = vector.extract_strided_slice %10 {offsets = [0, 0], sizes = [8, 256], strides = [1, 1]} : vector<32x256xf32> to vector<8x256xf32>
    %12 = vector.extract_strided_slice %10 {offsets = [8, 0], sizes = [8, 256], strides = [1, 1]} : vector<32x256xf32> to vector<8x256xf32>
    %13 = vector.extract_strided_slice %10 {offsets = [16, 0], sizes = [8, 256], strides = [1, 1]} : vector<32x256xf32> to vector<8x256xf32>
    %14 = vector.extract_strided_slice %10 {offsets = [24, 0], sizes = [8, 256], strides = [1, 1]} : vector<32x256xf32> to vector<8x256xf32>
    %cst_11 = arith.constant 0.000000e+00 : f32
    %15 = vector.broadcast %cst_11 : f32 to vector<8x17xf32>
    %cst_12 = arith.constant 0.000000e+00 : f32
    %16 = vector.broadcast %cst_12 : f32 to vector<8x34xf32>
    %cst_13 = arith.constant 0.000000e+00 : f32
    %17 = vector.broadcast %cst_13 : f32 to vector<8x17xf32>
    %c0_14 = arith.constant 0 : index
    %c0_15 = arith.constant 0 : index
    %18 = vector.load %arg11[%c0_14, %c0_15] : memref<8x290xf32, #tpu.memory_space<vmem>>, vector<8x17xf32>
    tpu.vector_store %arg11[%c0_14, %c0_15], %15 {strides = array<i32>} : memref<8x290xf32, #tpu.memory_space<vmem>>, vector<8x17xf32>,
    %c0_16 = arith.constant 0 : index
    %c17 = arith.constant 17 : index
    %19 = vector.load %arg11[%c0_16, %c17] : memref<8x290xf32, #tpu.memory_space<vmem>>, vector<8x256xf32>
    tpu.vector_store %arg11[%c0_16, %c17], %12 {strides = array<i32>} : memref<8x290xf32, #tpu.memory_space<vmem>>, vector<8x256xf32>,
    %c0_17 = arith.constant 0 : index
    %c273 = arith.constant 273 : index
    %20 = vector.load %arg11[%c0_17, %c273] : memref<8x290xf32, #tpu.memory_space<vmem>>, vector<8x17xf32>
    tpu.vector_store %arg11[%c0_17, %c273], %15 {strides = array<i32>} : memref<8x290xf32, #tpu.memory_space<vmem>>, vector<8x17xf32>,
    %c0_18 = arith.constant 0 : index
    %c0_19 = arith.constant 0 : index
    %21 = vector.load %arg12[%c0_18, %c0_19] : memref<8x324xf32, #tpu.memory_space<vmem>>, vector<8x34xf32>
    tpu.vector_store %arg12[%c0_18, %c0_19], %16 {strides = array<i32>} : memref<8x324xf32, #tpu.memory_space<vmem>>, vector<8x34xf32>,
    %c0_20 = arith.constant 0 : index
    %c34 = arith.constant 34 : index
    %22 = vector.load %arg12[%c0_20, %c34] : memref<8x324xf32, #tpu.memory_space<vmem>>, vector<8x256xf32>
    tpu.vector_store %arg12[%c0_20, %c34], %13 {strides = array<i32>} : memref<8x324xf32, #tpu.memory_space<vmem>>, vector<8x256xf32>,
    %c0_21 = arith.constant 0 : index
    %c290 = arith.constant 290 : index
    %23 = vector.load %arg12[%c0_21, %c290] : memref<8x324xf32, #tpu.memory_space<vmem>>, vector<8x34xf32>
    tpu.vector_store %arg12[%c0_21, %c290], %16 {strides = array<i32>} : memref<8x324xf32, #tpu.memory_space<vmem>>, vector<8x34xf32>,
    %c0_22 = arith.constant 0 : index
    %c0_23 = arith.constant 0 : index
    %24 = vector.load %arg13[%c0_22, %c0_23] : memref<8x290xf32, #tpu.memory_space<vmem>>, vector<8x17xf32>
    tpu.vector_store %arg13[%c0_22, %c0_23], %17 {strides = array<i32>} : memref<8x290xf32, #tpu.memory_space<vmem>>, vector<8x17xf32>,
    %c0_24 = arith.constant 0 : index
    %c17_25 = arith.constant 17 : index
    %25 = vector.load %arg13[%c0_24, %c17_25] : memref<8x290xf32, #tpu.memory_space<vmem>>, vector<8x256xf32>
    tpu.vector_store %arg13[%c0_24, %c17_25], %14 {strides = array<i32>} : memref<8x290xf32, #tpu.memory_space<vmem>>, vector<8x256xf32>,
    %c0_26 = arith.constant 0 : index
    %c273_27 = arith.constant 273 : index
    %26 = vector.load %arg13[%c0_26, %c273_27] : memref<8x290xf32, #tpu.memory_space<vmem>>, vector<8x17xf32>
    tpu.vector_store %arg13[%c0_26, %c273_27], %17 {strides = array<i32>} : memref<8x290xf32, #tpu.memory_space<vmem>>, vector<8x17xf32>,
    %c0_28 = arith.constant 0 : index
    %c0_29 = arith.constant 0 : index
    %27 = vector.load %arg12[%c0_28, %c0_29] : memref<8x324xf32, #tpu.memory_space<vmem>>, vector<8x256xf32>
    %28 = vector.broadcast %2 : vector<1x256xf32> to vector<8x256xf32>
    %29 = arith.mulf %27, %28 : vector<8x256xf32>
    %c0_30 = arith.constant 0 : index
    %c1_31 = arith.constant 1 : index
    %30 = vector.load %arg12[%c0_30, %c1_31] : memref<8x324xf32, #tpu.memory_space<vmem>>, vector<8x256xf32>
    %31 = vector.broadcast %3 : vector<1x256xf32> to vector<8x256xf32>
    %32 = arith.mulf %30, %31 : vector<8x256xf32>
    %c0_32 = arith.constant 0 : index
    %c2 = arith.constant 2 : index
    %33 = vector.load %arg12[%c0_32, %c2] : memref<8x324xf32, #tpu.memory_space<vmem>>, vector<8x256xf32>
    %c0_33 = arith.constant 0 : index
    %c3_34 = arith.constant 3 : index
    %34 = vector.load %arg12[%c0_33, %c3_34] : memref<8x324xf32, #tpu.memory_space<vmem>>, vector<8x256xf32>
    %35 = vector.broadcast %4 : vector<1x256xf32> to vector<8x256xf32>
    %36 = arith.mulf %34, %35 : vector<8x256xf32>
    %c0_35 = arith.constant 0 : index
    %c4_36 = arith.constant 4 : index
    %37 = vector.load %arg12[%c0_35, %c4_36] : memref<8x324xf32, #tpu.memory_space<vmem>>, vector<8x256xf32>
    %38 = vector.broadcast %5 : vector<1x256xf32> to vector<8x256xf32>
    %39 = arith.mulf %37, %38 : vector<8x256xf32>
    %40 = tpu.concatenate %29, %32, %33, %36, %39 in 0 : vector<8x256xf32>, vector<8x256xf32>, vector<8x256xf32>, vector<8x256xf32>, vector<8x256xf32> -> vector<40x256xf32>
    %c0_37 = arith.constant 0 : index
    %c0_38 = arith.constant 0 : index
    %c0_39 = arith.constant 0 : index
    %41 = vector.load %arg6[%c0_37, %c0_38, %c0_39] : memref<5x8x40xf32, #tpu.memory_space<vmem>>, vector<1x8x40xf32>
    %42 = vector.shape_cast %41 : vector<1x8x40xf32> to vector<8x40xf32>
    %cst_40 = arith.constant dense<0.000000e+00> : vector<8x256xf32>
    %43 = tpu.matmul %42, %40, %cst_40 {dimension_numbers = #tpu.dot_dimension_numbers<[1], [0], [0], [1], [0, 0, 1, 1], [], []>} : vector<8x40xf32>, vector<40x256xf32>, vector<8x256xf32> -> vector<8x256xf32>
    %c0_41 = arith.constant 0 : index
    %c16 = arith.constant 16 : index
    %44 = vector.load %arg12[%c0_41, %c16] : memref<8x324xf32, #tpu.memory_space<vmem>>, vector<8x256xf32>
    %45 = vector.broadcast %2 : vector<1x256xf32> to vector<8x256xf32>
    %46 = arith.mulf %44, %45 : vector<8x256xf32>
    %c0_42 = arith.constant 0 : index
    %c17_43 = arith.constant 17 : index
    %47 = vector.load %arg12[%c0_42, %c17_43] : memref<8x324xf32, #tpu.memory_space<vmem>>, vector<8x256xf32>
    %48 = vector.broadcast %3 : vector<1x256xf32> to vector<8x256xf32>
    %49 = arith.mulf %47, %48 : vector<8x256xf32>
    %c0_44 = arith.constant 0 : index
    %c18 = arith.constant 18 : index
    %50 = vector.load %arg12[%c0_44, %c18] : memref<8x324xf32, #tpu.memory_space<vmem>>, vector<8x256xf32>
    %c0_45 = arith.constant 0 : index
    %c19 = arith.constant 19 : index
    %51 = vector.load %arg12[%c0_45, %c19] : memref<8x324xf32, #tpu.memory_space<vmem>>, vector<8x256xf32>
    %52 = vector.broadcast %4 : vector<1x256xf32> to vector<8x256xf32>
    %53 = arith.mulf %51, %52 : vector<8x256xf32>
    %c0_46 = arith.constant 0 : index
    %c20 = arith.constant 20 : index
    %54 = vector.load %arg12[%c0_46, %c20] : memref<8x324xf32, #tpu.memory_space<vmem>>, vector<8x256xf32>
    %55 = vector.broadcast %5 : vector<1x256xf32> to vector<8x256xf32>
    %56 = arith.mulf %54, %55 : vector<8x256xf32>
    %57 = tpu.concatenate %46, %49, %50, %53, %56 in 0 : vector<8x256xf32>, vector<8x256xf32>, vector<8x256xf32>, vector<8x256xf32>, vector<8x256xf32> -> vector<40x256xf32>
    %c1_47 = arith.constant 1 : index
    %c0_48 = arith.constant 0 : index
    %c0_49 = arith.constant 0 : index
    %58 = vector.load %arg6[%c1_47, %c0_48, %c0_49] : memref<5x8x40xf32, #tpu.memory_space<vmem>>, vector<1x8x40xf32>
    %59 = vector.shape_cast %58 : vector<1x8x40xf32> to vector<8x40xf32>
    %cst_50 = arith.constant dense<0.000000e+00> : vector<8x256xf32>
    %60 = tpu.matmul %59, %57, %cst_50 {dimension_numbers = #tpu.dot_dimension_numbers<[1], [0], [0], [1], [0, 0, 1, 1], [], []>} : vector<8x40xf32>, vector<40x256xf32>, vector<8x256xf32> -> vector<8x256xf32>
    %61 = arith.addf %43, %60 : vector<8x256xf32>
    %c0_51 = arith.constant 0 : index
    %c32 = arith.constant 32 : index
    %62 = vector.load %arg12[%c0_51, %c32] : memref<8x324xf32, #tpu.memory_space<vmem>>, vector<8x256xf32>
    %63 = vector.broadcast %2 : vector<1x256xf32> to vector<8x256xf32>
    %64 = arith.mulf %62, %63 : vector<8x256xf32>
    %c0_52 = arith.constant 0 : index
    %c33 = arith.constant 33 : index
    %65 = vector.load %arg12[%c0_52, %c33] : memref<8x324xf32, #tpu.memory_space<vmem>>, vector<8x256xf32>
    %66 = vector.broadcast %3 : vector<1x256xf32> to vector<8x256xf32>
    %67 = arith.mulf %65, %66 : vector<8x256xf32>
    %c0_53 = arith.constant 0 : index
    %c34_54 = arith.constant 34 : index
    %68 = vector.load %arg12[%c0_53, %c34_54] : memref<8x324xf32, #tpu.memory_space<vmem>>, vector<8x256xf32>
    %c0_55 = arith.constant 0 : index
    %c35 = arith.constant 35 : index
    %69 = vector.load %arg12[%c0_55, %c35] : memref<8x324xf32, #tpu.memory_space<vmem>>, vector<8x256xf32>
    %70 = vector.broadcast %4 : vector<1x256xf32> to vector<8x256xf32>
    %71 = arith.mulf %69, %70 : vector<8x256xf32>
    %c0_56 = arith.constant 0 : index
    %c36 = arith.constant 36 : index
    %72 = vector.load %arg12[%c0_56, %c36] : memref<8x324xf32, #tpu.memory_space<vmem>>, vector<8x256xf32>
    %73 = vector.broadcast %5 : vector<1x256xf32> to vector<8x256xf32>
    %74 = arith.mulf %72, %73 : vector<8x256xf32>
    %75 = tpu.concatenate %64, %67, %68, %71, %74 in 0 : vector<8x256xf32>, vector<8x256xf32>, vector<8x256xf32>, vector<8x256xf32>, vector<8x256xf32> -> vector<40x256xf32>
    %c2_57 = arith.constant 2 : index
    %c0_58 = arith.constant 0 : index
    %c0_59 = arith.constant 0 : index
    %76 = vector.load %arg6[%c2_57, %c0_58, %c0_59] : memref<5x8x40xf32, #tpu.memory_space<vmem>>, vector<1x8x40xf32>
    %77 = vector.shape_cast %76 : vector<1x8x40xf32> to vector<8x40xf32>
    %cst_60 = arith.constant dense<0.000000e+00> : vector<8x256xf32>
    %78 = tpu.matmul %77, %75, %cst_60 {dimension_numbers = #tpu.dot_dimension_numbers<[1], [0], [0], [1], [0, 0, 1, 1], [], []>} : vector<8x40xf32>, vector<40x256xf32>, vector<8x256xf32> -> vector<8x256xf32>
    %79 = arith.addf %61, %78 : vector<8x256xf32>
    %c0_61 = arith.constant 0 : index
    %c48 = arith.constant 48 : index
    %80 = vector.load %arg12[%c0_61, %c48] : memref<8x324xf32, #tpu.memory_space<vmem>>, vector<8x256xf32>
    %81 = vector.broadcast %2 : vector<1x256xf32> to vector<8x256xf32>
    %82 = arith.mulf %80, %81 : vector<8x256xf32>
    %c0_62 = arith.constant 0 : index
    %c49 = arith.constant 49 : index
    %83 = vector.load %arg12[%c0_62, %c49] : memref<8x324xf32, #tpu.memory_space<vmem>>, vector<8x256xf32>
    %84 = vector.broadcast %3 : vector<1x256xf32> to vector<8x256xf32>
    %85 = arith.mulf %83, %84 : vector<8x256xf32>
    %c0_63 = arith.constant 0 : index
    %c50 = arith.constant 50 : index
    %86 = vector.load %arg12[%c0_63, %c50] : memref<8x324xf32, #tpu.memory_space<vmem>>, vector<8x256xf32>
    %c0_64 = arith.constant 0 : index
    %c51 = arith.constant 51 : index
    %87 = vector.load %arg12[%c0_64, %c51] : memref<8x324xf32, #tpu.memory_space<vmem>>, vector<8x256xf32>
    %88 = vector.broadcast %4 : vector<1x256xf32> to vector<8x256xf32>
    %89 = arith.mulf %87, %88 : vector<8x256xf32>
    %c0_65 = arith.constant 0 : index
    %c52 = arith.constant 52 : index
    %90 = vector.load %arg12[%c0_65, %c52] : memref<8x324xf32, #tpu.memory_space<vmem>>, vector<8x256xf32>
    %91 = vector.broadcast %5 : vector<1x256xf32> to vector<8x256xf32>
    %92 = arith.mulf %90, %91 : vector<8x256xf32>
    %93 = tpu.concatenate %82, %85, %86, %89, %92 in 0 : vector<8x256xf32>, vector<8x256xf32>, vector<8x256xf32>, vector<8x256xf32>, vector<8x256xf32> -> vector<40x256xf32>
    %c3_66 = arith.constant 3 : index
    %c0_67 = arith.constant 0 : index
    %c0_68 = arith.constant 0 : index
    %94 = vector.load %arg6[%c3_66, %c0_67, %c0_68] : memref<5x8x40xf32, #tpu.memory_space<vmem>>, vector<1x8x40xf32>
    %95 = vector.shape_cast %94 : vector<1x8x40xf32> to vector<8x40xf32>
    %cst_69 = arith.constant dense<0.000000e+00> : vector<8x256xf32>
    %96 = tpu.matmul %95, %93, %cst_69 {dimension_numbers = #tpu.dot_dimension_numbers<[1], [0], [0], [1], [0, 0, 1, 1], [], []>} : vector<8x40xf32>, vector<40x256xf32>, vector<8x256xf32> -> vector<8x256xf32>
    %97 = arith.addf %79, %96 : vector<8x256xf32>
    %c0_70 = arith.constant 0 : index
    %c64 = arith.constant 64 : index
    %98 = vector.load %arg12[%c0_70, %c64] : memref<8x324xf32, #tpu.memory_space<vmem>>, vector<8x256xf32>
    %99 = vector.broadcast %2 : vector<1x256xf32> to vector<8x256xf32>
    %100 = arith.mulf %98, %99 : vector<8x256xf32>
    %c0_71 = arith.constant 0 : index
    %c65 = arith.constant 65 : index
    %101 = vector.load %arg12[%c0_71, %c65] : memref<8x324xf32, #tpu.memory_space<vmem>>, vector<8x256xf32>
    %102 = vector.broadcast %3 : vector<1x256xf32> to vector<8x256xf32>
    %103 = arith.mulf %101, %102 : vector<8x256xf32>
    %c0_72 = arith.constant 0 : index
    %c66 = arith.constant 66 : index
    %104 = vector.load %arg12[%c0_72, %c66] : memref<8x324xf32, #tpu.memory_space<vmem>>, vector<8x256xf32>
    %c0_73 = arith.constant 0 : index
    %c67 = arith.constant 67 : index
    %105 = vector.load %arg12[%c0_73, %c67] : memref<8x324xf32, #tpu.memory_space<vmem>>, vector<8x256xf32>
    %106 = vector.broadcast %4 : vector<1x256xf32> to vector<8x256xf32>
    %107 = arith.mulf %105, %106 : vector<8x256xf32>
    %c0_74 = arith.constant 0 : index
    %c68 = arith.constant 68 : index
    %108 = vector.load %arg12[%c0_74, %c68] : memref<8x324xf32, #tpu.memory_space<vmem>>, vector<8x256xf32>
    %109 = vector.broadcast %5 : vector<1x256xf32> to vector<8x256xf32>
    %110 = arith.mulf %108, %109 : vector<8x256xf32>
    %111 = tpu.concatenate %100, %103, %104, %107, %110 in 0 : vector<8x256xf32>, vector<8x256xf32>, vector<8x256xf32>, vector<8x256xf32>, vector<8x256xf32> -> vector<40x256xf32>
    %c4_75 = arith.constant 4 : index
    %c0_76 = arith.constant 0 : index
    %c0_77 = arith.constant 0 : index
    %112 = vector.load %arg6[%c4_75, %c0_76, %c0_77] : memref<5x8x40xf32, #tpu.memory_space<vmem>>, vector<1x8x40xf32>
    %113 = vector.shape_cast %112 : vector<1x8x40xf32> to vector<8x40xf32>
    %cst_78 = arith.constant dense<0.000000e+00> : vector<8x256xf32>
    %114 = tpu.matmul %113, %111, %cst_78 {dimension_numbers = #tpu.dot_dimension_numbers<[1], [0], [0], [1], [0, 0, 1, 1], [], []>} : vector<8x40xf32>, vector<40x256xf32>, vector<8x256xf32> -> vector<8x256xf32>
    %115 = arith.addf %97, %114 : vector<8x256xf32>
    %c0_79 = arith.constant 0 : index
    %c0_80 = arith.constant 0 : index
    %116 = vector.load %arg7[%c0_79, %c0_80] : memref<8x1xf32, #tpu.memory_space<vmem>>, vector<8x1xf32>
    %117 = vector.broadcast %116 : vector<8x1xf32> to vector<8x256xf32>
    %118 = arith.addf %115, %117 : vector<8x256xf32>
    %c0_81 = arith.constant 0 : index
    %c0_82 = arith.constant 0 : index
    %119 = vector.load %arg11[%c0_81, %c0_82] : memref<8x290xf32, #tpu.memory_space<vmem>>, vector<8x256xf32>
    %120 = vector.broadcast %3 : vector<1x256xf32> to vector<8x256xf32>
    %121 = arith.mulf %119, %120 : vector<8x256xf32>
    %c0_83 = arith.constant 0 : index
    %c1_84 = arith.constant 1 : index
    %122 = vector.load %arg11[%c0_83, %c1_84] : memref<8x290xf32, #tpu.memory_space<vmem>>, vector<8x256xf32>
    %c0_85 = arith.constant 0 : index
    %c2_86 = arith.constant 2 : index
    %123 = vector.load %arg11[%c0_85, %c2_86] : memref<8x290xf32, #tpu.memory_space<vmem>>, vector<8x256xf32>
    %124 = vector.broadcast %4 : vector<1x256xf32> to vector<8x256xf32>
    %125 = arith.mulf %123, %124 : vector<8x256xf32>
    %126 = tpu.concatenate %121, %122, %125 in 0 : vector<8x256xf32>, vector<8x256xf32>, vector<8x256xf32> -> vector<24x256xf32>
    %c0_87 = arith.constant 0 : index
    %c0_88 = arith.constant 0 : index
    %c0_89 = arith.constant 0 : index
    %127 = vector.load %arg4[%c0_87, %c0_88, %c0_89] : memref<3x8x24xf32, #tpu.memory_space<vmem>>, vector<1x8x24xf32>
    %128 = vector.shape_cast %127 : vector<1x8x24xf32> to vector<8x24xf32>
    %cst_90 = arith.constant dense<0.000000e+00> : vector<8x256xf32>
    %129 = tpu.matmul %128, %126, %cst_90 {dimension_numbers = #tpu.dot_dimension_numbers<[1], [0], [0], [1], [0, 0, 1, 1], [], []>} : vector<8x24xf32>, vector<24x256xf32>, vector<8x256xf32> -> vector<8x256xf32>
    %c0_91 = arith.constant 0 : index
    %c16_92 = arith.constant 16 : index
    %130 = vector.load %arg11[%c0_91, %c16_92] : memref<8x290xf32, #tpu.memory_space<vmem>>, vector<8x256xf32>
    %131 = vector.broadcast %3 : vector<1x256xf32> to vector<8x256xf32>
    %132 = arith.mulf %130, %131 : vector<8x256xf32>
    %c0_93 = arith.constant 0 : index
    %c17_94 = arith.constant 17 : index
    %133 = vector.load %arg11[%c0_93, %c17_94] : memref<8x290xf32, #tpu.memory_space<vmem>>, vector<8x256xf32>
    %c0_95 = arith.constant 0 : index
    %c18_96 = arith.constant 18 : index
    %134 = vector.load %arg11[%c0_95, %c18_96] : memref<8x290xf32, #tpu.memory_space<vmem>>, vector<8x256xf32>
    %135 = vector.broadcast %4 : vector<1x256xf32> to vector<8x256xf32>
    %136 = arith.mulf %134, %135 : vector<8x256xf32>
    %137 = tpu.concatenate %132, %133, %136 in 0 : vector<8x256xf32>, vector<8x256xf32>, vector<8x256xf32> -> vector<24x256xf32>
    %c1_97 = arith.constant 1 : index
    %c0_98 = arith.constant 0 : index
    %c0_99 = arith.constant 0 : index
    %138 = vector.load %arg4[%c1_97, %c0_98, %c0_99] : memref<3x8x24xf32, #tpu.memory_space<vmem>>, vector<1x8x24xf32>
    %139 = vector.shape_cast %138 : vector<1x8x24xf32> to vector<8x24xf32>
    %cst_100 = arith.constant dense<0.000000e+00> : vector<8x256xf32>
    %140 = tpu.matmul %139, %137, %cst_100 {dimension_numbers = #tpu.dot_dimension_numbers<[1], [0], [0], [1], [0, 0, 1, 1], [], []>} : vector<8x24xf32>, vector<24x256xf32>, vector<8x256xf32> -> vector<8x256xf32>
    %141 = arith.addf %129, %140 : vector<8x256xf32>
    %c0_101 = arith.constant 0 : index
    %c32_102 = arith.constant 32 : index
    %142 = vector.load %arg11[%c0_101, %c32_102] : memref<8x290xf32, #tpu.memory_space<vmem>>, vector<8x256xf32>
    %143 = vector.broadcast %3 : vector<1x256xf32> to vector<8x256xf32>
    %144 = arith.mulf %142, %143 : vector<8x256xf32>
    %c0_103 = arith.constant 0 : index
    %c33_104 = arith.constant 33 : index
    %145 = vector.load %arg11[%c0_103, %c33_104] : memref<8x290xf32, #tpu.memory_space<vmem>>, vector<8x256xf32>
    %c0_105 = arith.constant 0 : index
    %c34_106 = arith.constant 34 : index
    %146 = vector.load %arg11[%c0_105, %c34_106] : memref<8x290xf32, #tpu.memory_space<vmem>>, vector<8x256xf32>
    %147 = vector.broadcast %4 : vector<1x256xf32> to vector<8x256xf32>
    %148 = arith.mulf %146, %147 : vector<8x256xf32>
    %149 = tpu.concatenate %144, %145, %148 in 0 : vector<8x256xf32>, vector<8x256xf32>, vector<8x256xf32> -> vector<24x256xf32>
    %c2_107 = arith.constant 2 : index
    %c0_108 = arith.constant 0 : index
    %c0_109 = arith.constant 0 : index
    %150 = vector.load %arg4[%c2_107, %c0_108, %c0_109] : memref<3x8x24xf32, #tpu.memory_space<vmem>>, vector<1x8x24xf32>
    %151 = vector.shape_cast %150 : vector<1x8x24xf32> to vector<8x24xf32>
    %cst_110 = arith.constant dense<0.000000e+00> : vector<8x256xf32>
    %152 = tpu.matmul %151, %149, %cst_110 {dimension_numbers = #tpu.dot_dimension_numbers<[1], [0], [0], [1], [0, 0, 1, 1], [], []>} : vector<8x24xf32>, vector<24x256xf32>, vector<8x256xf32> -> vector<8x256xf32>
    %153 = arith.addf %141, %152 : vector<8x256xf32>
    %c0_111 = arith.constant 0 : index
    %c0_112 = arith.constant 0 : index
    %154 = vector.load %arg5[%c0_111, %c0_112] : memref<8x1xf32, #tpu.memory_space<vmem>>, vector<8x1xf32>
    %155 = vector.broadcast %154 : vector<8x1xf32> to vector<8x256xf32>
    %156 = arith.addf %153, %155 : vector<8x256xf32>
    %c0_113 = arith.constant 0 : index
    %c0_114 = arith.constant 0 : index
    %157 = vector.load %arg13[%c0_113, %c0_114] : memref<8x290xf32, #tpu.memory_space<vmem>>, vector<8x256xf32>
    %158 = vector.broadcast %3 : vector<1x256xf32> to vector<8x256xf32>
    %159 = arith.mulf %157, %158 : vector<8x256xf32>
    %c0_115 = arith.constant 0 : index
    %c1_116 = arith.constant 1 : index
    %160 = vector.load %arg13[%c0_115, %c1_116] : memref<8x290xf32, #tpu.memory_space<vmem>>, vector<8x256xf32>
    %161 = arith.addf %159, %160 : vector<8x256xf32>
    %c0_117 = arith.constant 0 : index
    %c2_118 = arith.constant 2 : index
    %162 = vector.load %arg13[%c0_117, %c2_118] : memref<8x290xf32, #tpu.memory_space<vmem>>, vector<8x256xf32>
    %163 = vector.broadcast %4 : vector<1x256xf32> to vector<8x256xf32>
    %164 = arith.mulf %162, %163 : vector<8x256xf32>
    %165 = arith.addf %161, %164 : vector<8x256xf32>
    %c0_119 = arith.constant 0 : index
    %c16_120 = arith.constant 16 : index
    %166 = vector.load %arg13[%c0_119, %c16_120] : memref<8x290xf32, #tpu.memory_space<vmem>>, vector<8x256xf32>
    %167 = vector.broadcast %3 : vector<1x256xf32> to vector<8x256xf32>
    %168 = arith.mulf %166, %167 : vector<8x256xf32>
    %169 = arith.addf %165, %168 : vector<8x256xf32>
    %c0_121 = arith.constant 0 : index
    %c17_122 = arith.constant 17 : index
    %170 = vector.load %arg13[%c0_121, %c17_122] : memref<8x290xf32, #tpu.memory_space<vmem>>, vector<8x256xf32>
    %171 = arith.addf %169, %170 : vector<8x256xf32>
    %c0_123 = arith.constant 0 : index
    %c18_124 = arith.constant 18 : index
    %172 = vector.load %arg13[%c0_123, %c18_124] : memref<8x290xf32, #tpu.memory_space<vmem>>, vector<8x256xf32>
    %173 = vector.broadcast %4 : vector<1x256xf32> to vector<8x256xf32>
    %174 = arith.mulf %172, %173 : vector<8x256xf32>
    %175 = arith.addf %171, %174 : vector<8x256xf32>
    %c0_125 = arith.constant 0 : index
    %c32_126 = arith.constant 32 : index
    %176 = vector.load %arg13[%c0_125, %c32_126] : memref<8x290xf32, #tpu.memory_space<vmem>>, vector<8x256xf32>
    %177 = vector.broadcast %3 : vector<1x256xf32> to vector<8x256xf32>
    %178 = arith.mulf %176, %177 : vector<8x256xf32>
    %179 = arith.addf %175, %178 : vector<8x256xf32>
    %c0_127 = arith.constant 0 : index
    %c33_128 = arith.constant 33 : index
    %180 = vector.load %arg13[%c0_127, %c33_128] : memref<8x290xf32, #tpu.memory_space<vmem>>, vector<8x256xf32>
    %181 = arith.addf %179, %180 : vector<8x256xf32>
    %c0_129 = arith.constant 0 : index
    %c34_130 = arith.constant 34 : index
    %182 = vector.load %arg13[%c0_129, %c34_130] : memref<8x290xf32, #tpu.memory_space<vmem>>, vector<8x256xf32>
    %183 = vector.broadcast %4 : vector<1x256xf32> to vector<8x256xf32>
    %184 = arith.mulf %182, %183 : vector<8x256xf32>
    %185 = arith.addf %181, %184 : vector<8x256xf32>
    %cst_131 = arith.constant 0.111111112 : f32
    %186 = vector.broadcast %cst_131 : f32 to vector<8x256xf32>
    %187 = arith.mulf %185, %186 : vector<8x256xf32>
    %c0_132 = arith.constant 0 : index
    %c0_133 = arith.constant 0 : index
    %188 = vector.load %arg8[%c0_132, %c0_133] : memref<8x1xf32, #tpu.memory_space<vmem>>, vector<8x1xf32>
    %189 = vector.broadcast %188 : vector<8x1xf32> to vector<8x256xf32>
    %190 = arith.addf %187, %189 : vector<8x256xf32>
    %191 = tpu.concatenate %11, %118, %156, %190 in 0 : vector<8x256xf32>, vector<8x256xf32>, vector<8x256xf32>, vector<8x256xf32> -> vector<32x256xf32>
    %c0_134 = arith.constant 0 : index
    %c0_135 = arith.constant 0 : index
    %c0_136 = arith.constant 0 : index
    %192 = vector.load %arg10[%c0_134, %c0_135, %c0_136] : memref<1x32x256xf32, #tpu.memory_space<vmem>>, vector<1x32x256xf32>
    %193 = vector.shape_cast %192 : vector<1x32x256xf32> to vector<32x256xf32>
    %194 = vector.shape_cast %191 : vector<32x256xf32> to vector<1x32x256xf32>
    tpu.vector_store %arg10[%c0_134, %c0_135, %c0_136], %194 {strides = array<i32>} : memref<1x32x256xf32, #tpu.memory_space<vmem>>, vector<1x32x256xf32>,
    return
  }
  func.func @transform_0(%arg0: i32) -> (i32, i32, i32) {
    %c0_i32 = arith.constant 0 : i32
    %c0_i32_0 = arith.constant 0 : i32
    %c0_i32_1 = arith.constant 0 : i32
    return %arg0, %c0_i32, %c0_i32_0 : i32, i32, i32
  }
  func.func @transform_1(%arg0: i32) -> (i32, i32) {
    %c0_i32 = arith.constant 0 : i32
    %c0_i32_0 = arith.constant 0 : i32
    %c0_i32_1 = arith.constant 0 : i32
    return %c0_i32, %c0_i32_0 : i32, i32
  }
  func.func @transform_2(%arg0: i32) -> (i32, i32) {
    %c0_i32 = arith.constant 0 : i32
    %c0_i32_0 = arith.constant 0 : i32
    %c0_i32_1 = arith.constant 0 : i32
    return %c0_i32, %c0_i32_0 : i32, i32
  }
  func.func @transform_3(%arg0: i32) -> (i32, i32, i32) {
    %c0_i32 = arith.constant 0 : i32
    %c0_i32_0 = arith.constant 0 : i32
    %c0_i32_1 = arith.constant 0 : i32
    %c0_i32_2 = arith.constant 0 : i32
    return %c0_i32, %c0_i32_0, %c0_i32_1 : i32, i32, i32
  }
  func.func @transform_4(%arg0: i32) -> (i32, i32) {
    %c0_i32 = arith.constant 0 : i32
    %c0_i32_0 = arith.constant 0 : i32
    %c0_i32_1 = arith.constant 0 : i32
    return %c0_i32, %c0_i32_0 : i32, i32
  }
  func.func @transform_5(%arg0: i32) -> (i32, i32, i32) {
    %c0_i32 = arith.constant 0 : i32
    %c0_i32_0 = arith.constant 0 : i32
    %c0_i32_1 = arith.constant 0 : i32
    %c0_i32_2 = arith.constant 0 : i32
    return %c0_i32, %c0_i32_0, %c0_i32_1 : i32, i32, i32
  }
  func.func @transform_6(%arg0: i32) -> (i32, i32) {
    %c0_i32 = arith.constant 0 : i32
    %c0_i32_0 = arith.constant 0 : i32
    %c0_i32_1 = arith.constant 0 : i32
    return %c0_i32, %c0_i32_0 : i32, i32
  }
  func.func @transform_7(%arg0: i32) -> (i32, i32) {
    %c0_i32 = arith.constant 0 : i32
    %c0_i32_0 = arith.constant 0 : i32
    %c0_i32_1 = arith.constant 0 : i32
    return %c0_i32, %c0_i32_0 : i32, i32
  }
  func.func @transform_8(%arg0: i32) -> (i32, i32) {
    %c0_i32 = arith.constant 0 : i32
    %c0_i32_0 = arith.constant 0 : i32
    %c0_i32_1 = arith.constant 0 : i32
    return %c0_i32, %c0_i32_0 : i32, i32
  }
  func.func @transform_9(%arg0: i32) -> (i32, i32, i32) {
    %c0_i32 = arith.constant 0 : i32
    %c0_i32_0 = arith.constant 0 : i32
    %c0_i32_1 = arith.constant 0 : i32
    return %arg0, %c0_i32, %c0_i32_0 : i32, i32, i32
  }
}

</mosaic_0001>

<llo_original>
// kernel: inception_block.1
$region0: #{inception_block.1}
  #allocation0 [shape = 'u32[]', space=smem, size = 0x4, offset = 0x4, fixed_abs, tag = 'smem constant byte address 0x4 - core index']
  #allocation1 [shape = 'u32[144,128]{1,0:T(1,128)}', space=vmem, size = 0x12000, scoped, tag = 'internal scratch']
  #allocation2 [shape = 'f32[8,290]{1,0:T(8,128)}', space=vmem, size = 0x3000, scoped, tag = 'scratch operand']
  #allocation3 [shape = 'f32[8,324]{1,0:T(8,128)}', space=vmem, size = 0x3000, scoped, tag = 'scratch operand']
  #allocation4 [shape = 'f32[8,290]{1,0:T(8,128)}', space=vmem, size = 0x3000, scoped, tag = 'scratch operand']
  %s0 = inlined_call_operand.vmem [shape: f32[2,4,256], index: 0, kind: input, shape index: {}]
  %s1 = inlined_call_operand.vmem [shape: f32[32,4], index: 1, kind: input, shape index: {}]
  %s2 = inlined_call_operand.vmem [shape: f32[32,1], index: 2, kind: input, shape index: {}]
  %s3 = inlined_call_operand.vmem [shape: f32[3,8,24], index: 3, kind: input, shape index: {}]
  %s4 = inlined_call_operand.vmem [shape: f32[8,1], index: 4, kind: input, shape index: {}]
  %s5 = inlined_call_operand.vmem [shape: f32[5,8,40], index: 5, kind: input, shape index: {}]
  %s6 = inlined_call_operand.vmem [shape: f32[8,1], index: 6, kind: input, shape index: {}]
  %s7 = inlined_call_operand.vmem [shape: f32[8,1], index: 7, kind: input, shape index: {}]
  %s8 = inlined_call_operand.vmem [shape: f32[5,256], index: 8, kind: input, shape index: {}]
  %s9 = inlined_call_operand.vmem [shape: f32[2,32,256], index: 9, kind: output, shape index: {}]
  %s10 = sld [smem:[#allocation0]]
  $region69: #{inception_block.1} parent=0
    _
  %s12 = ssub.s32 1, %s10
  %s13 = scalar_select 0, %s12, %s10
  loop: start=0, step=1, limit=4
  $region2: #{inception_block.1} parent=0 // loop_pre_header
    _
  $region3: #{inception_block.1} parent=0 // loop_header
    %s15 = sphi 0, %s19
    %p16 = scmp.ge.s32.totalorder %s15, 4
    %s25 = sphi 0, %s27
    %s28 = sphi 0, %s25
    %s29 = sphi 0, %s28
    %s45 = sphi 0, %s29
    %s49 = sphi 0, %s49
    %s51 = sphi 0, %s49
    %s52 = sphi 0, %s51
    %s66 = sphi 0, %s52
    %s70 = sphi 0, %s70
    %s72 = sphi 0, %s70
    %s73 = sphi 0, %s72
    %s87 = sphi 0, %s73
    %s91 = sphi 0, %s91
    %s93 = sphi 0, %s91
    %s94 = sphi 0, %s93
    %s108 = sphi 0, %s94
    %s112 = sphi 0, %s112
    %s114 = sphi 0, %s112
    %s115 = sphi 0, %s114
    %s129 = sphi 0, %s115
    %s133 = sphi 0, %s133
    %s135 = sphi 0, %s133
    %s136 = sphi 0, %s135
    %s150 = sphi 0, %s136
    %s154 = sphi 0, %s154
    %s156 = sphi 0, %s154
    %s157 = sphi 0, %s156
    %s171 = sphi 0, %s157
    %s175 = sphi 0, %s175
    %s177 = sphi 0, %s175
    %s178 = sphi 0, %s177
    %s192 = sphi 0, %s178
    %s196 = sphi 0, %s196
    %s198 = sphi 0, %s196
    %s199 = sphi 0, %s198
    %s213 = sphi 0, %s199
    %s219 = sphi 0, %s221
    %s222 = sphi 0, %s219
    %s223 = sphi 0, %s222
    %s239 = sphi 0, %s223
  $region4: #{inception_block.1} parent=0 // loop_header_branch
    %18 = sbr.rel (%p16) target = $region8
  $region5: #{inception_block.1} parent=0 // loop_body
    %s20 = ssub.s32 %s15, 1
    %s21 = ssub.s32 %s15, 2
    %s22 = sadd.s32 %s15, 1
    %s23 = ssub.s32 %s15, %s22
    %p24 = scmp.eq.s32.totalorder %s23, 0
    %s26 = sadd.s32 %s25, 1
    %s27 = scalar_select %p24, %s25, %s26
    %p30 = pneg %p24
    %p31 = scmp.eq.s32.totalorder %s15, 1
    %p32 = por %p30, %p31
    %p33 = scmp.ne.s32.totalorder %s25, %s28
    %p34 = scmp.eq.s32.totalorder %s15, 0
    %p35 = por %p33, %p34
    %p36 = scmp.ne.s32.totalorder %s25, %s28
    %p37 = scmp.eq.s32.totalorder %s20, 1
    %p38 = por %p36, %p37
    %p39 = scmp.ne.s32.totalorder %s28, %s29
    %p40 = scmp.eq.s32.totalorder %s20, 0
    %p41 = por %p39, %p40
    %p42 = scmp.ne.s32.totalorder %s28, %s29
    %p43 = scmp.eq.s32.totalorder %s21, 1
    %p44 = por %p42, %p43
    %p46 = scmp.ne.s32.totalorder %s29, %s45
    %p47 = scmp.eq.s32.totalorder %s21, 0
    %p48 = por %p46, %p47
    %s50 = sadd.s32 %s49, 1
    %p53 = scmp.eq.s32.totalorder %s15, 1
    %p54 = scmp.ne.s32.totalorder %s49, %s51
    %p55 = scmp.eq.s32.totalorder %s15, 0
    %p56 = por %p54, %p55
    %p57 = scmp.ne.s32.totalorder %s49, %s51
    %p58 = scmp.eq.s32.totalorder %s20, 1
    %p59 = por %p57, %p58
    %p60 = scmp.ne.s32.totalorder %s51, %s52
    %p61 = scmp.eq.s32.totalorder %s20, 0
    %p62 = por %p60, %p61
    %p63 = scmp.ne.s32.totalorder %s51, %s52
    %p64 = scmp.eq.s32.totalorder %s21, 1
    %p65 = por %p63, %p64
    %p67 = scmp.ne.s32.totalorder %s52, %s66
    %p68 = scmp.eq.s32.totalorder %s21, 0
    %p69 = por %p67, %p68
    %s71 = sadd.s32 %s70, 1
    %p74 = scmp.eq.s32.totalorder %s15, 1
    %p75 = scmp.ne.s32.totalorder %s70, %s72
    %p76 = scmp.eq.s32.totalorder %s15, 0
    %p77 = por %p75, %p76
    %p78 = scmp.ne.s32.totalorder %s70, %s72
    %p79 = scmp.eq.s32.totalorder %s20, 1
    %p80 = por %p78, %p79
    %p81 = scmp.ne.s32.totalorder %s72, %s73
    %p82 = scmp.eq.s32.totalorder %s20, 0
    %p83 = por %p81, %p82
    %p84 = scmp.ne.s32.totalorder %s72, %s73
    %p85 = scmp.eq.s32.totalorder %s21, 1
    %p86 = por %p84, %p85
    %p88 = scmp.ne.s32.totalorder %s73, %s87
    %p89 = scmp.eq.s32.totalorder %s21, 0
    %p90 = por %p88, %p89
    %s92 = sadd.s32 %s91, 1
    %p95 = scmp.eq.s32.totalorder %s15, 1
    %p96 = scmp.ne.s32.totalorder %s91, %s93
    %p97 = scmp.eq.s32.totalorder %s15, 0
    %p98 = por %p96, %p97
    %p99 = scmp.ne.s32.totalorder %s91, %s93
    %p100 = scmp.eq.s32.totalorder %s20, 1
    %p101 = por %p99, %p100
    %p102 = scmp.ne.s32.totalorder %s93, %s94
    %p103 = scmp.eq.s32.totalorder %s20, 0
    %p104 = por %p102, %p103
    %p105 = scmp.ne.s32.totalorder %s93, %s94
    %p106 = scmp.eq.s32.totalorder %s21, 1
    %p107 = por %p105, %p106
    %p109 = scmp.ne.s32.totalorder %s94, %s108
    %p110 = scmp.eq.s32.totalorder %s21, 0
    %p111 = por %p109, %p110
    %s113 = sadd.s32 %s112, 1
    %p116 = scmp.eq.s32.totalorder %s15, 1
    %p117 = scmp.ne.s32.totalorder %s112, %s114
    %p118 = scmp.eq.s32.totalorder %s15, 0
    %p119 = por %p117, %p118
    %p120 = scmp.ne.s32.totalorder %s112, %s114
    %p121 = scmp.eq.s32.totalorder %s20, 1
    %p122 = por %p120, %p121
    %p123 = scmp.ne.s32.totalorder %s114, %s115
    %p124 = scmp.eq.s32.totalorder %s20, 0
    %p125 = por %p123, %p124
    %p126 = scmp.ne.s32.totalorder %s114, %s115
    %p127 = scmp.eq.s32.totalorder %s21, 1
    %p128 = por %p126, %p127
    %p130 = scmp.ne.s32.totalorder %s115, %s129
    %p131 = scmp.eq.s32.totalorder %s21, 0
    %p132 = por %p130, %p131
    %s134 = sadd.s32 %s133, 1
    %p137 = scmp.eq.s32.totalorder %s15, 1
    %p138 = scmp.ne.s32.totalorder %s133, %s135
    %p139 = scmp.eq.s32.totalorder %s15, 0
    %p140 = por %p138, %p139
    %p141 = scmp.ne.s32.totalorder %s133, %s135
    %p142 = scmp.eq.s32.totalorder %s20, 1
    %p143 = por %p141, %p142
    %p144 = scmp.ne.s32.totalorder %s135, %s136
    %p145 = scmp.eq.s32.totalorder %s20, 0
    %p146 = por %p144, %p145
    %p147 = scmp.ne.s32.totalorder %s135, %s136
    %p148 = scmp.eq.s32.totalorder %s21, 1
    %p149 = por %p147, %p148
    %p151 = scmp.ne.s32.totalorder %s136, %s150
    %p152 = scmp.eq.s32.totalorder %s21, 0
    %p153 = por %p151, %p152
    %s155 = sadd.s32 %s154, 1
    %p158 = scmp.eq.s32.totalorder %s15, 1
    %p159 = scmp.ne.s32.totalorder %s154, %s156
    %p160 = scmp.eq.s32.totalorder %s15, 0
    %p161 = por %p159, %p160
    %p162 = scmp.ne.s32.totalorder %s154, %s156
    %p163 = scmp.eq.s32.totalorder %s20, 1
    %p164 = por %p162, %p163
    %p165 = scmp.ne.s32.totalorder %s156, %s157
    %p166 = scmp.eq.s32.totalorder %s20, 0
    %p167 = por %p165, %p166
    %p168 = scmp.ne.s32.totalorder %s156, %s157
    %p169 = scmp.eq.s32.totalorder %s21, 1
    %p170 = por %p168, %p169
    %p172 = scmp.ne.s32.totalorder %s157, %s171
    %p173 = scmp.eq.s32.totalorder %s21, 0
    %p174 = por %p172, %p173
    %s176 = sadd.s32 %s175, 1
    %p179 = scmp.eq.s32.totalorder %s15, 1
    %p180 = scmp.ne.s32.totalorder %s175, %s177
    %p181 = scmp.eq.s32.totalorder %s15, 0
    %p182 = por %p180, %p181
    %p183 = scmp.ne.s32.totalorder %s175, %s177
    %p184 = scmp.eq.s32.totalorder %s20, 1
    %p185 = por %p183, %p184
    %p186 = scmp.ne.s32.totalorder %s177, %s178
    %p187 = scmp.eq.s32.totalorder %s20, 0
    %p188 = por %p186, %p187
    %p189 = scmp.ne.s32.totalorder %s177, %s178
    %p190 = scmp.eq.s32.totalorder %s21, 1
    %p191 = por %p189, %p190
    %p193 = scmp.ne.s32.totalorder %s178, %s192
    %p194 = scmp.eq.s32.totalorder %s21, 0
    %p195 = por %p193, %p194
    %s197 = sadd.s32 %s196, 1
    %p200 = scmp.eq.s32.totalorder %s15, 1
    %p201 = scmp.ne.s32.totalorder %s196, %s198
    %p202 = scmp.eq.s32.totalorder %s15, 0
    %p203 = por %p201, %p202
    %p204 = scmp.ne.s32.totalorder %s196, %s198
    %p205 = scmp.eq.s32.totalorder %s20, 1
    %p206 = por %p204, %p205
    %p207 = scmp.ne.s32.totalorder %s198, %s199
    %p208 = scmp.eq.s32.totalorder %s20, 0
    %p209 = por %p207, %p208
    %p210 = scmp.ne.s32.totalorder %s198, %s199
    %p211 = scmp.eq.s32.totalorder %s21, 1
    %p212 = por %p210, %p211
    %p214 = scmp.ne.s32.totalorder %s199, %s213
    %p215 = scmp.eq.s32.totalorder %s21, 0
    %p216 = por %p214, %p215
    %s217 = ssub.s32 %s15, %s22
    %p218 = scmp.eq.s32.totalorder %s217, 0
    %s220 = sadd.s32 %s219, 1
    %s221 = scalar_select %p218, %s219, %s220
    %p224 = pneg %p218
    %p225 = scmp.eq.s32.totalorder %s15, 1
    %p226 = por %p224, %p225
    %p227 = scmp.ne.s32.totalorder %s219, %s222
    %p228 = scmp.eq.s32.totalorder %s15, 0
    %p229 = por %p227, %p228
    %p230 = scmp.ne.s32.totalorder %s219, %s222
    %p231 = scmp.eq.s32.totalorder %s20, 1
    %p232 = por %p230, %p231
    %p233 = scmp.ne.s32.totalorder %s222, %s223
    %p234 = scmp.eq.s32.totalorder %s20, 0
    %p235 = por %p233, %p234
    %p236 = scmp.ne.s32.totalorder %s222, %s223
    %p237 = scmp.eq.s32.totalorder %s21, 1
    %p238 = por %p236, %p237
    %p240 = scmp.ne.s32.totalorder %s223, %s239
    %p241 = scmp.eq.s32.totalorder %s21, 0
    %p242 = por %p240, %p241
    %p243 = scmp.le.s32.totalorder 1, %s15
    %p244 = scmp.lt.s32.totalorder %s15, 3
    %p245 = pnand %p243, %p244
    %p246 = pneg %p245
    // Predicated region
    $region9: #{inception_block.1} parent=5 // pred_check
      _
    $region10: #{inception_block.1} parent=5 // pred_check_branch
      %248 = sbr.rel (%p245) target = $region12
    $region11: #{inception_block.1} parent=5 // pred_region
      %s249 = ssub.s32 %s15, 1
      // Predicated region
      $region13: #{inception_block.1} parent=11 // pred_check
        %p250 = pneg %p62
      $region14: #{inception_block.1} parent=11 // pred_check_branch
        %252 = sbr.rel (%p250) target = $region16
      $region15: #{inception_block.1} parent=11 // pred_region
        _
      $region16: #{inception_block.1} parent=11 // pred_fallthru
        _
      // Predicated region
      $region17: #{inception_block.1} parent=11 // pred_check
        %p253 = pneg %p83
      $region18: #{inception_block.1} parent=11 // pred_check_branch
        %255 = sbr.rel (%p253) target = $region20
      $region19: #{inception_block.1} parent=11 // pred_region
        _
      $region20: #{inception_block.1} parent=11 // pred_fallthru
        _
      // Predicated region
      $region21: #{inception_block.1} parent=11 // pred_check
        %p256 = pneg %p104
      $region22: #{inception_block.1} parent=11 // pred_check_branch
        %258 = sbr.rel (%p256) target = $region24
      $region23: #{inception_block.1} parent=11 // pred_region
        _
      $region24: #{inception_block.1} parent=11 // pred_fallthru
        _
      // Predicated region
      $region25: #{inception_block.1} parent=11 // pred_check
        %p259 = pneg %p125
      $region26: #{inception_block.1} parent=11 // pred_check_branch
        %261 = sbr.rel (%p259) target = $region28
      $region27: #{inception_block.1} parent=11 // pred_region
        _
      $region28: #{inception_block.1} parent=11 // pred_fallthru
        _
      // Predicated region
      $region29: #{inception_block.1} parent=11 // pred_check
        %p262 = pneg %p146
      $region30: #{inception_block.1} parent=11 // pred_check_branch
        %264 = sbr.rel (%p262) target = $region32
      $region31: #{inception_block.1} parent=11 // pred_region
        _
      $region32: #{inception_block.1} parent=11 // pred_fallthru
        _
      // Predicated region
      $region33: #{inception_block.1} parent=11 // pred_check
        %p265 = pneg %p167
      $region34: #{inception_block.1} parent=11 // pred_check_branch
        %267 = sbr.rel (%p265) target = $region36
      $region35: #{inception_block.1} parent=11 // pred_region
        _
      $region36: #{inception_block.1} parent=11 // pred_fallthru
        _
      // Predicated region
      $region37: #{inception_block.1} parent=11 // pred_check
        %p268 = pneg %p188
      $region38: #{inception_block.1} parent=11 // pred_check_branch
        %270 = sbr.rel (%p268) target = $region40
      $region39: #{inception_block.1} parent=11 // pred_region
        _
      $region40: #{inception_block.1} parent=11 // pred_fallthru
        _
      // Predicated region
      $region41: #{inception_block.1} parent=11 // pred_check
        %p271 = pneg %p209
      $region42: #{inception_block.1} parent=11 // pred_check_branch
        %273 = sbr.rel (%p271) target = $region44
      $region43: #{inception_block.1} parent=11 // pred_region
        _
      $region44: #{inception_block.1} parent=11 // pred_fallthru
        _
    $region12: #{inception_block.1} parent=5 // pred_fallthru
      _
    %p274 = scmp.lt.s32.totalorder %s15, 2
    // Predicated region
    $region45: #{inception_block.1} parent=5 // pred_check
      %p275 = pneg %p274
    $region46: #{inception_block.1} parent=5 // pred_check_branch
      %277 = sbr.rel (%p275) target = $region48
    $region47: #{inception_block.1} parent=5 // pred_region
      // Predicated region
      $region49: #{inception_block.1} parent=47 // pred_check
        %p278 = pneg %p35
      $region50: #{inception_block.1} parent=47 // pred_check_branch
        %280 = sbr.rel (%p278) target = $region52
      $region51: #{inception_block.1} parent=47 // pred_region
        %p281 = scmp.lt.s32.totalorder %s15, 1
        %s282 = scalar_select %p281, %s15, 1
        %s283 = smul.addr %s282, 2
        %s284 = smul.addr %s283, 4
        %s285 = scalar_lea.vmem %s0, %s284
      $region52: #{inception_block.1} parent=47 // pred_fallthru
        _
    $region48: #{inception_block.1} parent=5 // pred_fallthru
      _
    %p286 = scmp.le.s32.totalorder 1, %s15
    %p287 = scmp.lt.s32.totalorder %s15, 3
    %p288 = pnand %p286, %p287
    %p289 = pneg %p288
    // Predicated region
    $region53: #{inception_block.1} parent=5 // pred_check
      _
    $region54: #{inception_block.1} parent=5 // pred_check_branch
      %291 = sbr.rel (%p288) target = $region56
    $region55: #{inception_block.1} parent=5 // pred_region
      %s292 = ssub.s32 %s15, 1
      %p293 = scmp.lt.s32.totalorder %s20, 1
      %s294 = scalar_select %p293, %s20, 1
      %s295 = smul.addr %s294, 2
      %s296 = smul.addr %s295, 4
      %s297 = scalar_lea.vmem %s0, %s296
      %p298 = pneg %p41
      %p299 = pneg %p38
      %p300 = pneg %p62
      %p301 = pneg %p59
      %p302 = pneg %p83
      %p303 = pneg %p80
      %p304 = pneg %p104
      %p305 = pneg %p101
      %p306 = pneg %p125
      %p307 = pneg %p122
      %p308 = pneg %p146
      %p309 = pneg %p143
      %p310 = pneg %p167
      %p311 = pneg %p164
      %p312 = pneg %p188
      %p313 = pneg %p185
      %p314 = pneg %p209
      %p315 = pneg %p206
      %p316 = pneg %p235
      %p317 = pneg %p232
      %p318 = scmp.lt.s32.totalorder %s20, 1
      %s319 = scalar_select %p318, %s20, 1
      %s320 = smul.addr %s319, 8
      %s321 = smul.addr %s320, 8
      %s322 = scalar_lea.vmem %s9, %s321
      %p323 = scmp.lt.s32.totalorder %s20, 1
      %s324 = scalar_select %p323, %s20, 1
      %s325 = smul.addr %s324, 2
      %s326 = smul.addr %s325, 4
      %s327 = scalar_lea.vmem %s0, %s326
      %p328 = scmp.lt.s32.totalorder %s20, 1
      %s329 = scalar_select %p328, %s20, 1
      %s330 = smul.addr %s329, 8
      %s331 = smul.addr %s330, 8
      %s332 = scalar_lea.vmem %s9, %s331
      %v333 = vld [vmem:[%s327] sm:$0xff]
      %v334 = vld [vmem:[%s8] ss:$8 sm:$0x3]
      %s335 = scalar_lea.vmem %s8, 1
      %v336 = vld [vmem:[%s335] ss:$8 sm:$0x3]
      %s337 = scalar_lea.vmem %s8, 3
      %v338 = vld [vmem:[%s337] ss:$8 sm:$0x3]
      %s339 = scalar_lea.vmem %s8, 4
      %v340 = vld [vmem:[%s339] ss:$8 sm:$0x3]
      %v341 = vld [vmem:[%s1] sm:$0xff]
      %v342 = vld [vmem:[%s1 + $0x8] sm:$0xff]
      %v343 = vld [vmem:[%s1 + $0x10] sm:$0xff]
      %v344 = vld [vmem:[%s1 + $0x18] sm:$0xff]
      %v345 = vld [vmem:[%s2] sm:$0xff]
      %v346 = vld [vmem:[%s2 + $0x8] sm:$0xff]
      %v347 = vld [vmem:[%s2 + $0x10] sm:$0xff]
      %v348 = vld [vmem:[%s2 + $0x18] sm:$0xff]
      %350 = vset.pattern.permute.xlu0 0
      %351 = vperm.xlu0 %350, %v345
      %v352 = vpop.permute.xlu0 %351
      %355 = vset.pattern.permute.xlu0 0
      %356 = vperm.xlu0 %355, %v346
      %v357 = vpop.permute.xlu0 %356
      %360 = vset.pattern.permute.xlu0 0
      %361 = vperm.xlu0 %360, %v347
      %v362 = vpop.permute.xlu0 %361
      %365 = vset.pattern.permute.xlu0 0
      %366 = vperm.xlu0 %365, %v348
      %v367 = vpop.permute.xlu0 %366
      %v370 = vcombine.high %v333, %v333
      %vm371 = vcmask 31744
      %v373 = vsel %vm371, %v341, 0
      %v376 = vsel %vm371, %v342, 0
      %v379 = vsel %vm371, %v343, 0
      %v382 = vsel %vm371, %v344, 0
      %vm384 = vcmask 1043456
      %v385 = vsel %vm384, %v333, 0
      %v387 = vsel %vm384, %v370, 0
      %389 = vmatprep.subr.mxu0 %v387
      %390 = vmatpush1.msra.mxu0 %v385
      %391 = vmatprep.subr.mxu0 0.0
      %392 = vmatpush1.msra.mxu0 0.0
      %393 = vmatprep.subr.mxu0 0.0
      %394 = vmatpush1.msra.mxu0 0.0
      %395 = vmatprep.subr.mxu0 0.0
      %396 = vmatpush1.msra.mxu0 0.0
      %397 = vmatprep.subr.mxu0 0.0
      %398 = vmatpush1.msra.mxu0 0.0
      %399 = vmatprep.subr.mxu0 0.0
      %400 = vmatpush1.msra.mxu0 0.0
      %401 = vmatprep.subr.mxu0 0.0
      %402 = vmatpush1.msra.mxu0 0.0
      %403 = vmatprep.subr.mxu0 0.0
      %404 = vmatpush1.msra.mxu0 0.0
      %405 = vmatprep.subr.mxu0 0.0
      %406 = vmatpush1.msra.mxu0 0.0
      %407 = vmatprep.subr.mxu0 0.0
      %408 = vmatpush1.msra.mxu0 0.0
      %409 = vmatprep.subr.mxu0 0.0
      %410 = vmatpush1.msra.mxu0 0.0
      %411 = vmatprep.subr.mxu0 0.0
      %412 = vmatpush1.msra.mxu0 0.0
      %413 = vmatprep.subr.mxu0 0.0
      %414 = vmatpush1.msra.mxu0 0.0
      %415 = vmatprep.subr.mxu0 0.0
      %416 = vmatpush1.msra.mxu0 0.0
      %417 = vmatprep.subr.mxu0 0.0
      %418 = vmatpush1.msra.mxu0 0.0
      %419 = vmatprep.subr.mxu0 0.0
      %420 = vmatpush1.msra.mxu0 0.0
      %421 = vmatprep.subr.mxu0 0.0
      %422 = vmatpush1.msra.mxu0 0.0
      %423 = vmatprep.subr.mxu0 0.0
      %424 = vmatpush1.msra.mxu0 0.0
      %425 = vmatprep.subr.mxu0 0.0
      %426 = vmatpush1.msra.mxu0 0.0
      %427 = vmatprep.subr.mxu0 0.0
      %428 = vmatpush1.msra.mxu0 0.0
      %429 = vmatprep.subr.mxu0 0.0
      %430 = vmatpush1.msra.mxu0 0.0
      %431 = vmatprep.subr.mxu0 0.0
      %432 = vmatpush1.msra.mxu0 0.0
      %433 = vmatprep.subr.mxu0 0.0
      %434 = vmatpush1.msra.mxu0 0.0
      %435 = vmatprep.subr.mxu0 0.0
      %436 = vmatpush1.msra.mxu0 0.0
      %437 = vmatprep.subr.mxu0 0.0
      %438 = vmatpush1.msra.mxu0 0.0
      %439 = vmatprep.subr.mxu0 0.0
      %440 = vmatpush1.msra.mxu0 0.0
      %441 = vmatprep.subr.mxu0 0.0
      %442 = vmatpush1.msra.mxu0 0.0
      %443 = vmatprep.subr.mxu0 0.0
      %444 = vmatpush1.msra.mxu0 0.0
      %445 = vmatprep.subr.mxu0 0.0
      %446 = vmatpush1.msra.mxu0 0.0
      %447 = vmatprep.subr.mxu0 0.0
      %448 = vmatpush1.msra.mxu0 0.0
      %449 = vmatprep.subr.mxu0 0.0
      %450 = vmatpush1.msra.mxu0 0.0
      %451 = vmatprep.subr.mxu0 0.0
      %452 = vmatpush1.msra.mxu0 0.0
      %453 = vmatprep.mubr.f32.mxu0 0.0
      %454 = vmatmul.mubr.f32.gmra.mrb[0].mxu0 %v373
      %v455 = vpop.f32.mrb[0].mxu0
      %v456 = vadd.f32 %v352, %v455
      %v457 = vpop.f32.mrb[0].mxu0
      %v458 = vadd.f32 %v352, %v457
      %459 = vmatprep.mubr.f32.mxu0 0.0
      %460 = vmatmul.mubr.f32.gmra.mrb[0].mxu0 %v376
      %v461 = vpop.f32.mrb[0].mxu0
      %v462 = vadd.f32 %v357, %v461
      %v463 = vpop.f32.mrb[0].mxu0
      %v464 = vadd.f32 %v357, %v463
      %465 = vmatprep.mubr.f32.mxu0 0.0
      %466 = vmatmul.mubr.f32.gmra.mrb[0].mxu0 %v379
      %v467 = vpop.f32.mrb[0].mxu0
      %v468 = vadd.f32 %v362, %v467
      %v469 = vpop.f32.mrb[0].mxu0
      %v470 = vadd.f32 %v362, %v469
      %471 = vmatprep.mubr.f32.mxu0 0.0
      %472 = vmatmul.mubr.f32.gmra.mrb[0].mxu0 %v382
      %v473 = vpop.f32.mrb[0].mxu0
      %v474 = vadd.f32 %v367, %v473
      %v475 = vpop.f32.mrb[0].mxu0
      %v476 = vadd.f32 %v367, %v475
      %477 = vdwg.mxu0
      %vm478 = vcmask 138240
      %479 = vst.msk [vmem:[#allocation2] sm:$0xff] %vm478, 0.0
      %482 = vrot.lane.b32.xlu0 %v462, 17
      %v483 = vpop.permute.xlu0 %482
      %484 = vrot.lane.b32.xlu0 %v464, 17
      %v485 = vpop.permute.xlu0 %484
      %v486 = vsel %vm478, %v483, %v485
      %vm490 = vcmask 1047688
      %491 = vst.msk [vmem:[#allocation2] sm:$0xff] %vm490, %v483
      %492 = vst [vmem:[#allocation2 + $0x8] sm:$0xff] %v486
      %493 = vst.msk [vmem:[#allocation2 + $0x10] sm:$0xff] %vm478, %v485
      %vm494 = vcmask 277640
      %495 = vst.msk [vmem:[#allocation2 + $0x10] sm:$0xff] %vm494, 0.0
      %vm496 = vcmask 277504
      %497 = vst.msk [vmem:[#allocation3] sm:$0xff] %vm496, 0.0
      %500 = vrot.lane.b32.xlu0 %v468, 34
      %v501 = vpop.permute.xlu0 %500
      %502 = vrot.lane.b32.xlu0 %v470, 34
      %v503 = vpop.permute.xlu0 %502
      %v504 = vsel %vm496, %v501, %v503
      %vm508 = vcmask 1047824
      %509 = vst.msk [vmem:[#allocation3] sm:$0xff] %vm508, %v501
      %510 = vst [vmem:[#allocation3 + $0x8] sm:$0xff] %v504
      %511 = vst.msk [vmem:[#allocation3 + $0x10] sm:$0xff] %vm496, %v503
      %vm512 = vcmask 556304
      %513 = vst.msk [vmem:[#allocation3 + $0x10] sm:$0xff] %vm512, 0.0
      %514 = vst.msk [vmem:[#allocation4] sm:$0xff] %vm478, 0.0
      %517 = vrot.lane.b32.xlu0 %v474, 17
      %v518 = vpop.permute.xlu0 %517
      %519 = vrot.lane.b32.xlu0 %v476, 17
      %v520 = vpop.permute.xlu0 %519
      %v521 = vsel %vm478, %v518, %v520
      %525 = vst.msk [vmem:[#allocation4] sm:$0xff] %vm490, %v518
      %526 = vst [vmem:[#allocation4 + $0x8] sm:$0xff] %v521
      %527 = vst.msk [vmem:[#allocation4 + $0x10] sm:$0xff] %vm478, %v520
      %528 = vst.msk [vmem:[#allocation4 + $0x10] sm:$0xff] %vm494, 0.0
      %v529 = vld [vmem:[#allocation3] sm:$0xff]
      %v530 = vld [vmem:[#allocation3 + $0x8] sm:$0xff]
      %v532 = vlaneseq
      %v533 = vshrl.u32 %v532, 7
      %v534 = vsub.s32 0, %v533
      %v535 = vrot.slane %v334, %v534
      %v536 = vlaneseq
      %v537 = vshrl.u32 %v536, 7
      %v538 = vsub.s32 1, %v537
      %v539 = vrot.slane %v334, %v538
      %v542 = vmul.f32 %v529, %v535
      %v543 = vmul.f32 %v530, %v539
      %v544 = vld [vmem:[#allocation3 + $0x10] sm:$0xff]
      %v546 = vlaneseq
      %v547 = vshrl.u32 %v546, 7
      %v548 = vsub.s32 0, %v547
      %v549 = vrot.slane %v336, %v548
      %v550 = vlaneseq
      %v551 = vshrl.u32 %v550, 7
      %v552 = vsub.s32 1, %v551
      %v553 = vrot.slane %v336, %v552
      %556 = vrot.lane.b32.xlu0 %v549, 1
      %v557 = vpop.permute.xlu0 %556
      %558 = vrot.lane.b32.xlu0 %v553, 1
      %v559 = vpop.permute.xlu0 %558
      %vm560 = vcmask 7168
      %v561 = vsel %vm560, %v557, %v559
      %v565 = vmul.f32 %v529, %v557
      %v566 = vmul.f32 %v530, %v561
      %v567 = vmul.f32 %v544, %v559
      %v569 = vlaneseq
      %v570 = vshrl.u32 %v569, 7
      %v571 = vsub.s32 0, %v570
      %v572 = vrot.slane %v338, %v571
      %v573 = vlaneseq
      %v574 = vshrl.u32 %v573, 7
      %v575 = vsub.s32 1, %v574
      %v576 = vrot.slane %v338, %v575
      %577 = vrot.lane.b32.xlu0 %v572, 3
      %v578 = vpop.permute.xlu0 %577
      %579 = vrot.lane.b32.xlu0 %v576, 3
      %v580 = vpop.permute.xlu0 %579
      %vm581 = vcmask 23552
      %v582 = vsel %vm581, %v578, %v580
      %v586 = vmul.f32 %v529, %v578
      %v587 = vmul.f32 %v530, %v582
      %v588 = vmul.f32 %v544, %v580
      %v590 = vlaneseq
      %v591 = vshrl.u32 %v590, 7
      %v592 = vsub.s32 0, %v591
      %v593 = vrot.slane %v340, %v592
      %v594 = vlaneseq
      %v595 = vshrl.u32 %v594, 7
      %v596 = vsub.s32 1, %v595
      %v597 = vrot.slane %v340, %v596
      %598 = vrot.lane.b32.xlu0 %v593, 4
      %v599 = vpop.permute.xlu0 %598
      %600 = vrot.lane.b32.xlu0 %v597, 4
      %v601 = vpop.permute.xlu0 %600
      %v602 = vsel %vm371, %v599, %v601
      %v606 = vmul.f32 %v529, %v599
      %v607 = vmul.f32 %v530, %v602
      %v608 = vmul.f32 %v544, %v601
      %612 = vrot.lane.b32.xlu0 %v565, 127
      %v613 = vpop.permute.xlu0 %612
      %614 = vrot.lane.b32.xlu0 %v566, 127
      %v615 = vpop.permute.xlu0 %614
      %616 = vrot.lane.b32.xlu0 %v567, 127
      %v617 = vpop.permute.xlu0 %616
      %vm618 = vcmask 1039360
      %v619 = vsel %vm618, %v613, %v615
      %v620 = vsel %vm618, %v615, %v617
      %626 = vrot.lane.b32.xlu0 %v529, 126
      %v627 = vpop.permute.xlu0 %626
      %628 = vrot.lane.b32.xlu0 %v530, 126
      %v629 = vpop.permute.xlu0 %628
      %630 = vrot.lane.b32.xlu0 %v544, 126
      %v631 = vpop.permute.xlu0 %630
      %vm632 = vcmask 1031168
      %v633 = vsel %vm632, %v627, %v629
      %v634 = vsel %vm632, %v629, %v631
      %640 = vrot.lane.b32.xlu0 %v586, 125
      %v641 = vpop.permute.xlu0 %640
      %642 = vrot.lane.b32.xlu0 %v587, 125
      %v643 = vpop.permute.xlu0 %642
      %644 = vrot.lane.b32.xlu0 %v588, 125
      %v645 = vpop.permute.xlu0 %644
      %vm646 = vcmask 1022976
      %v647 = vsel %vm646, %v641, %v643
      %v648 = vsel %vm646, %v643, %v645
      %654 = vrot.lane.b32.xlu0 %v606, 124
      %v655 = vpop.permute.xlu0 %654
      %656 = vrot.lane.b32.xlu0 %v607, 124
      %v657 = vpop.permute.xlu0 %656
      %658 = vrot.lane.b32.xlu0 %v608, 124
      %v659 = vpop.permute.xlu0 %658
      %vm660 = vcmask 1014784
      %v661 = vsel %vm660, %v655, %v657
      %v662 = vsel %vm660, %v657, %v659
      %v665 = vld [vmem:[%s5] sm:$0xff]
      %666 = vrot.lane.b32.xlu0 %v535, 16
      %v667 = vpop.permute.xlu0 %666
      %668 = vrot.lane.b32.xlu0 %v539, 16
      %v669 = vpop.permute.xlu0 %668
      %vm670 = vcmask 130048
      %v671 = vsel %vm670, %v667, %v669
      %v675 = vmul.f32 %v529, %v667
      %v676 = vmul.f32 %v530, %v671
      %v677 = vmul.f32 %v544, %v669
      %678 = vrot.lane.b32.xlu0 %v549, 17
      %v679 = vpop.permute.xlu0 %678
      %680 = vrot.lane.b32.xlu0 %v553, 17
      %v681 = vpop.permute.xlu0 %680
      %v682 = vsel %vm478, %v679, %v681
      %v686 = vmul.f32 %v529, %v679
      %v687 = vmul.f32 %v530, %v682
      %v688 = vmul.f32 %v544, %v681
      %689 = vrot.lane.b32.xlu0 %v572, 19
      %v690 = vpop.permute.xlu0 %689
      %691 = vrot.lane.b32.xlu0 %v576, 19
      %v692 = vpop.permute.xlu0 %691
      %vm693 = vcmask 154624
      %v694 = vsel %vm693, %v690, %v692
      %v698 = vmul.f32 %v529, %v690
      %v699 = vmul.f32 %v530, %v694
      %v700 = vmul.f32 %v544, %v692
      %701 = vrot.lane.b32.xlu0 %v593, 20
      %v702 = vpop.permute.xlu0 %701
      %703 = vrot.lane.b32.xlu0 %v597, 20
      %v704 = vpop.permute.xlu0 %703
      %vm705 = vcmask 162816
      %v706 = vsel %vm705, %v702, %v704
      %v710 = vmul.f32 %v529, %v702
      %v711 = vmul.f32 %v530, %v706
      %v712 = vmul.f32 %v544, %v704
      %716 = vrot.lane.b32.xlu0 %v686, 127
      %v717 = vpop.permute.xlu0 %716
      %718 = vrot.lane.b32.xlu0 %v687, 127
      %v719 = vpop.permute.xlu0 %718
      %720 = vrot.lane.b32.xlu0 %v688, 127
      %v721 = vpop.permute.xlu0 %720
      %v722 = vsel %vm618, %v717, %v719
      %v723 = vsel %vm618, %v719, %v721
      %727 = vrot.lane.b32.xlu0 %v698, 125
      %v728 = vpop.permute.xlu0 %727
      %729 = vrot.lane.b32.xlu0 %v699, 125
      %v730 = vpop.permute.xlu0 %729
      %731 = vrot.lane.b32.xlu0 %v700, 125
      %v732 = vpop.permute.xlu0 %731
      %v733 = vsel %vm646, %v728, %v730
      %v734 = vsel %vm646, %v730, %v732
      %738 = vrot.lane.b32.xlu0 %v710, 124
      %v739 = vpop.permute.xlu0 %738
      %740 = vrot.lane.b32.xlu0 %v711, 124
      %v741 = vpop.permute.xlu0 %740
      %742 = vrot.lane.b32.xlu0 %v712, 124
      %v743 = vpop.permute.xlu0 %742
      %v744 = vsel %vm660, %v739, %v741
      %v745 = vsel %vm660, %v741, %v743
      %s746 = scalar_lea.vmem %s5, 8
      %v747 = vld [vmem:[%s746] sm:$0xff]
      %751 = vrot.lane.b32.xlu0 %v675, 112
      %v752 = vpop.permute.xlu0 %751
      %753 = vrot.lane.b32.xlu0 %v676, 112
      %v754 = vpop.permute.xlu0 %753
      %755 = vrot.lane.b32.xlu0 %v677, 112
      %v756 = vpop.permute.xlu0 %755
      %757 = vrot.lane.b32.xlu0 %v722, 112
      %v758 = vpop.permute.xlu0 %757
      %759 = vrot.lane.b32.xlu0 %v723, 112
      %v760 = vpop.permute.xlu0 %759
      %761 = vrot.lane.b32.xlu0 %v721, 112
      %v762 = vpop.permute.xlu0 %761
      %763 = vrot.lane.b32.xlu0 %v633, 112
      %v764 = vpop.permute.xlu0 %763
      %765 = vrot.lane.b32.xlu0 %v634, 112
      %v766 = vpop.permute.xlu0 %765
      %767 = vrot.lane.b32.xlu0 %v631, 112
      %v768 = vpop.permute.xlu0 %767
      %769 = vrot.lane.b32.xlu0 %v733, 112
      %v770 = vpop.permute.xlu0 %769
      %771 = vrot.lane.b32.xlu0 %v734, 112
      %v772 = vpop.permute.xlu0 %771
      %773 = vrot.lane.b32.xlu0 %v732, 112
      %v774 = vpop.permute.xlu0 %773
      %775 = vrot.lane.b32.xlu0 %v744, 112
      %v776 = vpop.permute.xlu0 %775
      %777 = vrot.lane.b32.xlu0 %v745, 112
      %v778 = vpop.permute.xlu0 %777
      %779 = vrot.lane.b32.xlu0 %v743, 112
      %v780 = vpop.permute.xlu0 %779
      %vm781 = vcmask 916480
      %v782 = vsel %vm781, %v752, %v754
      %v783 = vsel %vm781, %v754, %v756
      %v784 = vsel %vm781, %v758, %v760
      %v785 = vsel %vm781, %v760, %v762
      %v786 = vsel %vm781, %v764, %v766
      %v787 = vsel %vm781, %v766, %v768
      %v788 = vsel %vm781, %v770, %v772
      %v789 = vsel %vm781, %v772, %v774
      %v790 = vsel %vm781, %v776, %v778
      %v791 = vsel %vm781, %v778, %v780
      %vm802 = vcmask 326656
      %v804 = vsel %vm802, %v747, 0
      %806 = vmatprep.subr.mxu0 %v783
      %807 = vmatpush1.msra.mxu0 %v782
      %808 = vmatprep.subr.mxu0 %v785
      %809 = vmatpush1.msra.mxu0 %v784
      %810 = vmatprep.subr.mxu0 %v787
      %811 = vmatpush1.msra.mxu0 %v786
      %812 = vmatprep.subr.mxu0 %v789
      %813 = vmatpush1.msra.mxu0 %v788
      %814 = vmatprep.subr.mxu0 %v791
      %815 = vmatpush1.msra.mxu0 %v790
      %816 = vmatprep.subr.mxu0 0.0
      %817 = vmatpush1.msra.mxu0 0.0
      %818 = vmatprep.subr.mxu0 0.0
      %819 = vmatpush1.msra.mxu0 0.0
      %820 = vmatprep.subr.mxu0 0.0
      %821 = vmatpush1.msra.mxu0 0.0
      %822 = vmatprep.subr.mxu0 0.0
      %823 = vmatpush1.msra.mxu0 0.0
      %824 = vmatprep.subr.mxu0 0.0
      %825 = vmatpush1.msra.mxu0 0.0
      %826 = vmatprep.subr.mxu0 0.0
      %827 = vmatpush1.msra.mxu0 0.0
      %828 = vmatprep.subr.mxu0 0.0
      %829 = vmatpush1.msra.mxu0 0.0
      %830 = vmatprep.subr.mxu0 0.0
      %831 = vmatpush1.msra.mxu0 0.0
      %832 = vmatprep.subr.mxu0 0.0
      %833 = vmatpush1.msra.mxu0 0.0
      %834 = vmatprep.subr.mxu0 0.0
      %835 = vmatpush1.msra.mxu0 0.0
      %836 = vmatprep.subr.mxu0 0.0
      %837 = vmatpush1.msra.mxu0 0.0
      %838 = vmatprep.subr.mxu0 0.0
      %839 = vmatpush1.msra.mxu0 0.0
      %840 = vmatprep.subr.mxu0 0.0
      %841 = vmatpush1.msra.mxu0 0.0
      %842 = vmatprep.subr.mxu0 0.0
      %843 = vmatpush1.msra.mxu0 0.0
      %844 = vmatprep.subr.mxu0 0.0
      %845 = vmatpush1.msra.mxu0 0.0
      %846 = vmatprep.subr.mxu0 0.0
      %847 = vmatpush1.msra.mxu0 0.0
      %848 = vmatprep.subr.mxu0 0.0
      %849 = vmatpush1.msra.mxu0 0.0
      %850 = vmatprep.subr.mxu0 0.0
      %851 = vmatpush1.msra.mxu0 0.0
      %852 = vmatprep.subr.mxu0 0.0
      %853 = vmatpush1.msra.mxu0 0.0
      %854 = vmatprep.subr.mxu0 0.0
      %855 = vmatpush1.msra.mxu0 0.0
      %856 = vmatprep.subr.mxu0 0.0
      %857 = vmatpush1.msra.mxu0 0.0
      %858 = vmatprep.subr.mxu0 0.0
      %859 = vmatpush1.msra.mxu0 0.0
      %860 = vmatprep.subr.mxu0 0.0
      %861 = vmatpush1.msra.mxu0 0.0
      %862 = vmatprep.subr.mxu0 0.0
      %863 = vmatpush1.msra.mxu0 0.0
      %864 = vmatprep.subr.mxu0 0.0
      %865 = vmatpush1.msra.mxu0 0.0
      %866 = vmatprep.subr.mxu0 0.0
      %867 = vmatpush1.msra.mxu0 0.0
      %868 = vmatprep.subr.mxu0 0.0
      %869 = vmatpush1.msra.mxu0 0.0
      %870 = vmatprep.mubr.f32.mxu0 0.0
      %871 = vmatmul.mubr.f32.gmra.mrb[0].mxu0 %v804
      %v872 = vpop.f32.mrb[0].mxu0
      %v873 = vadd.f32 0.0, %v872
      %v874 = vpop.f32.mrb[0].mxu0
      %v875 = vadd.f32 0.0, %v874
      %876 = vdwg.mxu0
      %v878 = vsel %vm802, %v665, 0
      %880 = vmatprep.subr.mxu0 %v543
      %881 = vmatpush1.msra.mxu0 %v542
      %882 = vmatprep.subr.mxu0 %v620
      %883 = vmatpush1.msra.mxu0 %v619
      %884 = vmatprep.subr.mxu0 %v634
      %885 = vmatpush1.msra.mxu0 %v633
      %886 = vmatprep.subr.mxu0 %v648
      %887 = vmatpush1.msra.mxu0 %v647
      %888 = vmatprep.subr.mxu0 %v662
      %889 = vmatpush1.msra.mxu0 %v661
      %890 = vmatprep.subr.mxu0 0.0
      %891 = vmatpush1.msra.mxu0 0.0
      %892 = vmatprep.subr.mxu0 0.0
      %893 = vmatpush1.msra.mxu0 0.0
      %894 = vmatprep.subr.mxu0 0.0
      %895 = vmatpush1.msra.mxu0 0.0
      %896 = vmatprep.subr.mxu0 0.0
      %897 = vmatpush1.msra.mxu0 0.0
      %898 = vmatprep.subr.mxu0 0.0
      %899 = vmatpush1.msra.mxu0 0.0
      %900 = vmatprep.subr.mxu0 0.0
      %901 = vmatpush1.msra.mxu0 0.0
      %902 = vmatprep.subr.mxu0 0.0
      %903 = vmatpush1.msra.mxu0 0.0
      %904 = vmatprep.subr.mxu0 0.0
      %905 = vmatpush1.msra.mxu0 0.0
      %906 = vmatprep.subr.mxu0 0.0
      %907 = vmatpush1.msra.mxu0 0.0
      %908 = vmatprep.subr.mxu0 0.0
      %909 = vmatpush1.msra.mxu0 0.0
      %910 = vmatprep.subr.mxu0 0.0
      %911 = vmatpush1.msra.mxu0 0.0
      %912 = vmatprep.subr.mxu0 0.0
      %913 = vmatpush1.msra.mxu0 0.0
      %914 = vmatprep.subr.mxu0 0.0
      %915 = vmatpush1.msra.mxu0 0.0
      %916 = vmatprep.subr.mxu0 0.0
      %917 = vmatpush1.msra.mxu0 0.0
      %918 = vmatprep.subr.mxu0 0.0
      %919 = vmatpush1.msra.mxu0 0.0
      %920 = vmatprep.subr.mxu0 0.0
      %921 = vmatpush1.msra.mxu0 0.0
      %922 = vmatprep.subr.mxu0 0.0
      %923 = vmatpush1.msra.mxu0 0.0
      %924 = vmatprep.subr.mxu0 0.0
      %925 = vmatpush1.msra.mxu0 0.0
      %926 = vmatprep.subr.mxu0 0.0
      %927 = vmatpush1.msra.mxu0 0.0
      %928 = vmatprep.subr.mxu0 0.0
      %929 = vmatpush1.msra.mxu0 0.0
      %930 = vmatprep.subr.mxu0 0.0
      %931 = vmatpush1.msra.mxu0 0.0
      %932 = vmatprep.subr.mxu0 0.0
      %933 = vmatpush1.msra.mxu0 0.0
      %934 = vmatprep.subr.mxu0 0.0
      %935 = vmatpush1.msra.mxu0 0.0
      %936 = vmatprep.subr.mxu0 0.0
      %937 = vmatpush1.msra.mxu0 0.0
      %938 = vmatprep.subr.mxu0 0.0
      %939 = vmatpush1.msra.mxu0 0.0
      %940 = vmatprep.subr.mxu0 0.0
      %941 = vmatpush1.msra.mxu0 0.0
      %942 = vmatprep.subr.mxu0 0.0
      %943 = vmatpush1.msra.mxu0 0.0
      %944 = vmatprep.mubr.f32.mxu0 0.0
      %945 = vmatmul.mubr.f32.gmra.mrb[0].mxu0 %v878
      %v946 = vpop.f32.mrb[0].mxu0
      %v947 = vadd.f32 %v873, %v946
      %v948 = vpop.f32.mrb[0].mxu0
      %v949 = vadd.f32 %v875, %v948
      %950 = vdwg.mxu0
      %951 = vrot.lane.b32.xlu0 %v535, 32
      %v952 = vpop.permute.xlu0 %951
      %953 = vrot.lane.b32.xlu0 %v539, 32
      %v954 = vpop.permute.xlu0 %953
      %vm955 = vcmask 261120
      %v956 = vsel %vm955, %v952, %v954
      %v960 = vmul.f32 %v529, %v952
      %v961 = vmul.f32 %v530, %v956
      %v962 = vmul.f32 %v544, %v954
      %963 = vrot.lane.b32.xlu0 %v549, 33
      %v964 = vpop.permute.xlu0 %963
      %965 = vrot.lane.b32.xlu0 %v553, 33
      %v966 = vpop.permute.xlu0 %965
      %vm967 = vcmask 269312
      %v968 = vsel %vm967, %v964, %v966
      %v972 = vmul.f32 %v529, %v964
      %v973 = vmul.f32 %v530, %v968
      %v974 = vmul.f32 %v544, %v966
      %975 = vrot.lane.b32.xlu0 %v572, 35
      %v976 = vpop.permute.xlu0 %975
      %977 = vrot.lane.b32.xlu0 %v576, 35
      %v978 = vpop.permute.xlu0 %977
      %vm979 = vcmask 285696
      %v980 = vsel %vm979, %v976, %v978
      %v984 = vmul.f32 %v529, %v976
      %v985 = vmul.f32 %v530, %v980
      %v986 = vmul.f32 %v544, %v978
      %987 = vrot.lane.b32.xlu0 %v593, 36
      %v988 = vpop.permute.xlu0 %987
      %989 = vrot.lane.b32.xlu0 %v597, 36
      %v990 = vpop.permute.xlu0 %989
      %vm991 = vcmask 293888
      %v992 = vsel %vm991, %v988, %v990
      %v996 = vmul.f32 %v529, %v988
      %v997 = vmul.f32 %v530, %v992
      %v998 = vmul.f32 %v544, %v990
      %1002 = vrot.lane.b32.xlu0 %v972, 127
      %v1003 = vpop.permute.xlu0 %1002
      %1004 = vrot.lane.b32.xlu0 %v973, 127
      %v1005 = vpop.permute.xlu0 %1004
      %1006 = vrot.lane.b32.xlu0 %v974, 127
      %v1007 = vpop.permute.xlu0 %1006
      %v1008 = vsel %vm618, %v1003, %v1005
      %v1009 = vsel %vm618, %v1005, %v1007
      %1013 = vrot.lane.b32.xlu0 %v984, 125
      %v1014 = vpop.permute.xlu0 %1013
      %1015 = vrot.lane.b32.xlu0 %v985, 125
      %v1016 = vpop.permute.xlu0 %1015
      %1017 = vrot.lane.b32.xlu0 %v986, 125
      %v1018 = vpop.permute.xlu0 %1017
      %v1019 = vsel %vm646, %v1014, %v1016
      %v1020 = vsel %vm646, %v1016, %v1018
      %1024 = vrot.lane.b32.xlu0 %v996, 124
      %v1025 = vpop.permute.xlu0 %1024
      %1026 = vrot.lane.b32.xlu0 %v997, 124
      %v1027 = vpop.permute.xlu0 %1026
      %1028 = vrot.lane.b32.xlu0 %v998, 124
      %v1029 = vpop.permute.xlu0 %1028
      %v1030 = vsel %vm660, %v1025, %v1027
      %v1031 = vsel %vm660, %v1027, %v1029
      %s1032 = scalar_lea.vmem %s5, 16
      %v1033 = vld [vmem:[%s1032] sm:$0xff]
      %1037 = vrot.lane.b32.xlu0 %v960, 96
      %v1038 = vpop.permute.xlu0 %1037
      %1039 = vrot.lane.b32.xlu0 %v961, 96
      %v1040 = vpop.permute.xlu0 %1039
      %1041 = vrot.lane.b32.xlu0 %v962, 96
      %v1042 = vpop.permute.xlu0 %1041
      %1043 = vrot.lane.b32.xlu0 %v1008, 96
      %v1044 = vpop.permute.xlu0 %1043
      %1045 = vrot.lane.b32.xlu0 %v1009, 96
      %v1046 = vpop.permute.xlu0 %1045
      %1047 = vrot.lane.b32.xlu0 %v1007, 96
      %v1048 = vpop.permute.xlu0 %1047
      %1049 = vrot.lane.b32.xlu0 %v633, 96
      %v1050 = vpop.permute.xlu0 %1049
      %1051 = vrot.lane.b32.xlu0 %v634, 96
      %v1052 = vpop.permute.xlu0 %1051
      %1053 = vrot.lane.b32.xlu0 %v631, 96
      %v1054 = vpop.permute.xlu0 %1053
      %1055 = vrot.lane.b32.xlu0 %v1019, 96
      %v1056 = vpop.permute.xlu0 %1055
      %1057 = vrot.lane.b32.xlu0 %v1020, 96
      %v1058 = vpop.permute.xlu0 %1057
      %1059 = vrot.lane.b32.xlu0 %v1018, 96
      %v1060 = vpop.permute.xlu0 %1059
      %1061 = vrot.lane.b32.xlu0 %v1030, 96
      %v1062 = vpop.permute.xlu0 %1061
      %1063 = vrot.lane.b32.xlu0 %v1031, 96
      %v1064 = vpop.permute.xlu0 %1063
      %1065 = vrot.lane.b32.xlu0 %v1029, 96
      %v1066 = vpop.permute.xlu0 %1065
      %vm1067 = vcmask 785408
      %v1068 = vsel %vm1067, %v1038, %v1040
      %v1069 = vsel %vm1067, %v1040, %v1042
      %v1070 = vsel %vm1067, %v1044, %v1046
      %v1071 = vsel %vm1067, %v1046, %v1048
      %v1072 = vsel %vm1067, %v1050, %v1052
      %v1073 = vsel %vm1067, %v1052, %v1054
      %v1074 = vsel %vm1067, %v1056, %v1058
      %v1075 = vsel %vm1067, %v1058, %v1060
      %v1076 = vsel %vm1067, %v1062, %v1064
      %v1077 = vsel %vm1067, %v1064, %v1066
      %v1089 = vsel %vm802, %v1033, 0
      %1091 = vmatprep.subr.mxu0 %v1069
      %1092 = vmatpush1.msra.mxu0 %v1068
      %1093 = vmatprep.subr.mxu0 %v1071
      %1094 = vmatpush1.msra.mxu0 %v1070
      %1095 = vmatprep.subr.mxu0 %v1073
      %1096 = vmatpush1.msra.mxu0 %v1072
      %1097 = vmatprep.subr.mxu0 %v1075
      %1098 = vmatpush1.msra.mxu0 %v1074
      %1099 = vmatprep.subr.mxu0 %v1077
      %1100 = vmatpush1.msra.mxu0 %v1076
      %1101 = vmatprep.subr.mxu0 0.0
      %1102 = vmatpush1.msra.mxu0 0.0
      %1103 = vmatprep.subr.mxu0 0.0
      %1104 = vmatpush1.msra.mxu0 0.0
      %1105 = vmatprep.subr.mxu0 0.0
      %1106 = vmatpush1.msra.mxu0 0.0
      %1107 = vmatprep.subr.mxu0 0.0
      %1108 = vmatpush1.msra.mxu0 0.0
      %1109 = vmatprep.subr.mxu0 0.0
      %1110 = vmatpush1.msra.mxu0 0.0
      %1111 = vmatprep.subr.mxu0 0.0
      %1112 = vmatpush1.msra.mxu0 0.0
      %1113 = vmatprep.subr.mxu0 0.0
      %1114 = vmatpush1.msra.mxu0 0.0
      %1115 = vmatprep.subr.mxu0 0.0
      %1116 = vmatpush1.msra.mxu0 0.0
      %1117 = vmatprep.subr.mxu0 0.0
      %1118 = vmatpush1.msra.mxu0 0.0
      %1119 = vmatprep.subr.mxu0 0.0
      %1120 = vmatpush1.msra.mxu0 0.0
      %1121 = vmatprep.subr.mxu0 0.0
      %1122 = vmatpush1.msra.mxu0 0.0
      %1123 = vmatprep.subr.mxu0 0.0
      %1124 = vmatpush1.msra.mxu0 0.0
      %1125 = vmatprep.subr.mxu0 0.0
      %1126 = vmatpush1.msra.mxu0 0.0
      %1127 = vmatprep.subr.mxu0 0.0
      %1128 = vmatpush1.msra.mxu0 0.0
      %1129 = vmatprep.subr.mxu0 0.0
      %1130 = vmatpush1.msra.mxu0 0.0
      %1131 = vmatprep.subr.mxu0 0.0
      %1132 = vmatpush1.msra.mxu0 0.0
      %1133 = vmatprep.subr.mxu0 0.0
      %1134 = vmatpush1.msra.mxu0 0.0
      %1135 = vmatprep.subr.mxu0 0.0
      %1136 = vmatpush1.msra.mxu0 0.0
      %1137 = vmatprep.subr.mxu0 0.0
      %1138 = vmatpush1.msra.mxu0 0.0
      %1139 = vmatprep.subr.mxu0 0.0
      %1140 = vmatpush1.msra.mxu0 0.0
      %1141 = vmatprep.subr.mxu0 0.0
      %1142 = vmatpush1.msra.mxu0 0.0
      %1143 = vmatprep.subr.mxu0 0.0
      %1144 = vmatpush1.msra.mxu0 0.0
      %1145 = vmatprep.subr.mxu0 0.0
      %1146 = vmatpush1.msra.mxu0 0.0
      %1147 = vmatprep.subr.mxu0 0.0
      %1148 = vmatpush1.msra.mxu0 0.0
      %1149 = vmatprep.subr.mxu0 0.0
      %1150 = vmatpush1.msra.mxu0 0.0
      %1151 = vmatprep.subr.mxu0 0.0
      %1152 = vmatpush1.msra.mxu0 0.0
      %1153 = vmatprep.subr.mxu0 0.0
      %1154 = vmatpush1.msra.mxu0 0.0
      %1155 = vmatprep.mubr.f32.mxu0 0.0
      %1156 = vmatmul.mubr.f32.gmra.mrb[0].mxu0 %v1089
      %v1157 = vpop.f32.mrb[0].mxu0
      %v1158 = vadd.f32 0.0, %v1157
      %v1159 = vpop.f32.mrb[0].mxu0
      %v1160 = vadd.f32 0.0, %v1159
      %1161 = vdwg.mxu0
      %v1162 = vadd.f32 %v947, %v1158
      %v1163 = vadd.f32 %v949, %v1160
      %1164 = vrot.lane.b32.xlu0 %v535, 48
      %v1165 = vpop.permute.xlu0 %1164
      %1166 = vrot.lane.b32.xlu0 %v539, 48
      %v1167 = vpop.permute.xlu0 %1166
      %vm1168 = vcmask 392192
      %v1169 = vsel %vm1168, %v1165, %v1167
      %v1173 = vmul.f32 %v529, %v1165
      %v1174 = vmul.f32 %v530, %v1169
      %v1175 = vmul.f32 %v544, %v1167
      %1176 = vrot.lane.b32.xlu0 %v549, 49
      %v1177 = vpop.permute.xlu0 %1176
      %1178 = vrot.lane.b32.xlu0 %v553, 49
      %v1179 = vpop.permute.xlu0 %1178
      %vm1180 = vcmask 400384
      %v1181 = vsel %vm1180, %v1177, %v1179
      %v1185 = vmul.f32 %v529, %v1177
      %v1186 = vmul.f32 %v530, %v1181
      %v1187 = vmul.f32 %v544, %v1179
      %1188 = vrot.lane.b32.xlu0 %v572, 51
      %v1189 = vpop.permute.xlu0 %1188
      %1190 = vrot.lane.b32.xlu0 %v576, 51
      %v1191 = vpop.permute.xlu0 %1190
      %vm1192 = vcmask 416768
      %v1193 = vsel %vm1192, %v1189, %v1191
      %v1197 = vmul.f32 %v529, %v1189
      %v1198 = vmul.f32 %v530, %v1193
      %v1199 = vmul.f32 %v544, %v1191
      %1200 = vrot.lane.b32.xlu0 %v593, 52
      %v1201 = vpop.permute.xlu0 %1200
      %1202 = vrot.lane.b32.xlu0 %v597, 52
      %v1203 = vpop.permute.xlu0 %1202
      %vm1204 = vcmask 424960
      %v1205 = vsel %vm1204, %v1201, %v1203
      %v1209 = vmul.f32 %v529, %v1201
      %v1210 = vmul.f32 %v530, %v1205
      %v1211 = vmul.f32 %v544, %v1203
      %1215 = vrot.lane.b32.xlu0 %v1185, 127
      %v1216 = vpop.permute.xlu0 %1215
      %1217 = vrot.lane.b32.xlu0 %v1186, 127
      %v1218 = vpop.permute.xlu0 %1217
      %1219 = vrot.lane.b32.xlu0 %v1187, 127
      %v1220 = vpop.permute.xlu0 %1219
      %v1221 = vsel %vm618, %v1216, %v1218
      %v1222 = vsel %vm618, %v1218, %v1220
      %1226 = vrot.lane.b32.xlu0 %v1197, 125
      %v1227 = vpop.permute.xlu0 %1226
      %1228 = vrot.lane.b32.xlu0 %v1198, 125
      %v1229 = vpop.permute.xlu0 %1228
      %1230 = vrot.lane.b32.xlu0 %v1199, 125
      %v1231 = vpop.permute.xlu0 %1230
      %v1232 = vsel %vm646, %v1227, %v1229
      %v1233 = vsel %vm646, %v1229, %v1231
      %1237 = vrot.lane.b32.xlu0 %v1209, 124
      %v1238 = vpop.permute.xlu0 %1237
      %1239 = vrot.lane.b32.xlu0 %v1210, 124
      %v1240 = vpop.permute.xlu0 %1239
      %1241 = vrot.lane.b32.xlu0 %v1211, 124
      %v1242 = vpop.permute.xlu0 %1241
      %v1243 = vsel %vm660, %v1238, %v1240
      %v1244 = vsel %vm660, %v1240, %v1242
      %s1245 = scalar_lea.vmem %s5, 24
      %v1246 = vld [vmem:[%s1245] sm:$0xff]
      %1250 = vrot.lane.b32.xlu0 %v1173, 80
      %v1251 = vpop.permute.xlu0 %1250
      %1252 = vrot.lane.b32.xlu0 %v1174, 80
      %v1253 = vpop.permute.xlu0 %1252
      %1254 = vrot.lane.b32.xlu0 %v1175, 80
      %v1255 = vpop.permute.xlu0 %1254
      %1256 = vrot.lane.b32.xlu0 %v1221, 80
      %v1257 = vpop.permute.xlu0 %1256
      %1258 = vrot.lane.b32.xlu0 %v1222, 80
      %v1259 = vpop.permute.xlu0 %1258
      %1260 = vrot.lane.b32.xlu0 %v1220, 80
      %v1261 = vpop.permute.xlu0 %1260
      %1262 = vrot.lane.b32.xlu0 %v633, 80
      %v1263 = vpop.permute.xlu0 %1262
      %1264 = vrot.lane.b32.xlu0 %v634, 80
      %v1265 = vpop.permute.xlu0 %1264
      %1266 = vrot.lane.b32.xlu0 %v631, 80
      %v1267 = vpop.permute.xlu0 %1266
      %1268 = vrot.lane.b32.xlu0 %v1232, 80
      %v1269 = vpop.permute.xlu0 %1268
      %1270 = vrot.lane.b32.xlu0 %v1233, 80
      %v1271 = vpop.permute.xlu0 %1270
      %1272 = vrot.lane.b32.xlu0 %v1231, 80
      %v1273 = vpop.permute.xlu0 %1272
      %1274 = vrot.lane.b32.xlu0 %v1243, 80
      %v1275 = vpop.permute.xlu0 %1274
      %1276 = vrot.lane.b32.xlu0 %v1244, 80
      %v1277 = vpop.permute.xlu0 %1276
      %1278 = vrot.lane.b32.xlu0 %v1242, 80
      %v1279 = vpop.permute.xlu0 %1278
      %vm1280 = vcmask 654336
      %v1281 = vsel %vm1280, %v1251, %v1253
      %v1282 = vsel %vm1280, %v1253, %v1255
      %v1283 = vsel %vm1280, %v1257, %v1259
      %v1284 = vsel %vm1280, %v1259, %v1261
      %v1285 = vsel %vm1280, %v1263, %v1265
      %v1286 = vsel %vm1280, %v1265, %v1267
      %v1287 = vsel %vm1280, %v1269, %v1271
      %v1288 = vsel %vm1280, %v1271, %v1273
      %v1289 = vsel %vm1280, %v1275, %v1277
      %v1290 = vsel %vm1280, %v1277, %v1279
      %v1302 = vsel %vm802, %v1246, 0
      %1304 = vmatprep.subr.mxu0 %v1282
      %1305 = vmatpush1.msra.mxu0 %v1281
      %1306 = vmatprep.subr.mxu0 %v1284
      %1307 = vmatpush1.msra.mxu0 %v1283
      %1308 = vmatprep.subr.mxu0 %v1286
      %1309 = vmatpush1.msra.mxu0 %v1285
      %1310 = vmatprep.subr.mxu0 %v1288
      %1311 = vmatpush1.msra.mxu0 %v1287
      %1312 = vmatprep.subr.mxu0 %v1290
      %1313 = vmatpush1.msra.mxu0 %v1289
      %1314 = vmatprep.subr.mxu0 0.0
      %1315 = vmatpush1.msra.mxu0 0.0
      %1316 = vmatprep.subr.mxu0 0.0
      %1317 = vmatpush1.msra.mxu0 0.0
      %1318 = vmatprep.subr.mxu0 0.0
      %1319 = vmatpush1.msra.mxu0 0.0
      %1320 = vmatprep.subr.mxu0 0.0
      %1321 = vmatpush1.msra.mxu0 0.0
      %1322 = vmatprep.subr.mxu0 0.0
      %1323 = vmatpush1.msra.mxu0 0.0
      %1324 = vmatprep.subr.mxu0 0.0
      %1325 = vmatpush1.msra.mxu0 0.0
      %1326 = vmatprep.subr.mxu0 0.0
      %1327 = vmatpush1.msra.mxu0 0.0
      %1328 = vmatprep.subr.mxu0 0.0
      %1329 = vmatpush1.msra.mxu0 0.0
      %1330 = vmatprep.subr.mxu0 0.0
      %1331 = vmatpush1.msra.mxu0 0.0
      %1332 = vmatprep.subr.mxu0 0.0
      %1333 = vmatpush1.msra.mxu0 0.0
      %1334 = vmatprep.subr.mxu0 0.0
      %1335 = vmatpush1.msra.mxu0 0.0
      %1336 = vmatprep.subr.mxu0 0.0
      %1337 = vmatpush1.msra.mxu0 0.0
      %1338 = vmatprep.subr.mxu0 0.0
      %1339 = vmatpush1.msra.mxu0 0.0
      %1340 = vmatprep.subr.mxu0 0.0
      %1341 = vmatpush1.msra.mxu0 0.0
      %1342 = vmatprep.subr.mxu0 0.0
      %1343 = vmatpush1.msra.mxu0 0.0
      %1344 = vmatprep.subr.mxu0 0.0
      %1345 = vmatpush1.msra.mxu0 0.0
      %1346 = vmatprep.subr.mxu0 0.0
      %1347 = vmatpush1.msra.mxu0 0.0
      %1348 = vmatprep.subr.mxu0 0.0
      %1349 = vmatpush1.msra.mxu0 0.0
      %1350 = vmatprep.subr.mxu0 0.0
      %1351 = vmatpush1.msra.mxu0 0.0
      %1352 = vmatprep.subr.mxu0 0.0
      %1353 = vmatpush1.msra.mxu0 0.0
      %1354 = vmatprep.subr.mxu0 0.0
      %1355 = vmatpush1.msra.mxu0 0.0
      %1356 = vmatprep.subr.mxu0 0.0
      %1357 = vmatpush1.msra.mxu0 0.0
      %1358 = vmatprep.subr.mxu0 0.0
      %1359 = vmatpush1.msra.mxu0 0.0
      %1360 = vmatprep.subr.mxu0 0.0
      %1361 = vmatpush1.msra.mxu0 0.0
      %1362 = vmatprep.subr.mxu0 0.0
      %1363 = vmatpush1.msra.mxu0 0.0
      %1364 = vmatprep.subr.mxu0 0.0
      %1365 = vmatpush1.msra.mxu0 0.0
      %1366 = vmatprep.subr.mxu0 0.0
      %1367 = vmatpush1.msra.mxu0 0.0
      %1368 = vmatprep.mubr.f32.mxu0 0.0
      %1369 = vmatmul.mubr.f32.gmra.mrb[0].mxu0 %v1302
      %v1370 = vpop.f32.mrb[0].mxu0
      %v1371 = vadd.f32 0.0, %v1370
      %v1372 = vpop.f32.mrb[0].mxu0
      %v1373 = vadd.f32 0.0, %v1372
      %1374 = vdwg.mxu0
      %v1375 = vadd.f32 %v1162, %v1371
      %v1376 = vadd.f32 %v1163, %v1373
      %1377 = vrot.lane.b32.xlu0 %v535, 64
      %v1378 = vpop.permute.xlu0 %1377
      %1379 = vrot.lane.b32.xlu0 %v539, 64
      %v1380 = vpop.permute.xlu0 %1379
      %vm1381 = vcmask 523264
      %v1382 = vsel %vm1381, %v1378, %v1380
      %v1386 = vmul.f32 %v529, %v1378
      %v1387 = vmul.f32 %v530, %v1382
      %v1388 = vmul.f32 %v544, %v1380
      %1389 = vrot.lane.b32.xlu0 %v549, 65
      %v1390 = vpop.permute.xlu0 %1389
      %1391 = vrot.lane.b32.xlu0 %v553, 65
      %v1392 = vpop.permute.xlu0 %1391
      %vm1393 = vcmask 531456
      %v1394 = vsel %vm1393, %v1390, %v1392
      %v1398 = vmul.f32 %v529, %v1390
      %v1399 = vmul.f32 %v530, %v1394
      %v1400 = vmul.f32 %v544, %v1392
      %1401 = vrot.lane.b32.xlu0 %v572, 67
      %v1402 = vpop.permute.xlu0 %1401
      %1403 = vrot.lane.b32.xlu0 %v576, 67
      %v1404 = vpop.permute.xlu0 %1403
      %vm1405 = vcmask 547840
      %v1406 = vsel %vm1405, %v1402, %v1404
      %v1410 = vmul.f32 %v529, %v1402
      %v1411 = vmul.f32 %v530, %v1406
      %v1412 = vmul.f32 %v544, %v1404
      %1413 = vrot.lane.b32.xlu0 %v593, 68
      %v1414 = vpop.permute.xlu0 %1413
      %1415 = vrot.lane.b32.xlu0 %v597, 68
      %v1416 = vpop.permute.xlu0 %1415
      %vm1417 = vcmask 556032
      %v1418 = vsel %vm1417, %v1414, %v1416
      %v1422 = vmul.f32 %v529, %v1414
      %v1423 = vmul.f32 %v530, %v1418
      %v1424 = vmul.f32 %v544, %v1416
      %1428 = vrot.lane.b32.xlu0 %v1398, 127
      %v1429 = vpop.permute.xlu0 %1428
      %1430 = vrot.lane.b32.xlu0 %v1399, 127
      %v1431 = vpop.permute.xlu0 %1430
      %1432 = vrot.lane.b32.xlu0 %v1400, 127
      %v1433 = vpop.permute.xlu0 %1432
      %v1434 = vsel %vm618, %v1429, %v1431
      %v1435 = vsel %vm618, %v1431, %v1433
      %1439 = vrot.lane.b32.xlu0 %v1410, 125
      %v1440 = vpop.permute.xlu0 %1439
      %1441 = vrot.lane.b32.xlu0 %v1411, 125
      %v1442 = vpop.permute.xlu0 %1441
      %1443 = vrot.lane.b32.xlu0 %v1412, 125
      %v1444 = vpop.permute.xlu0 %1443
      %v1445 = vsel %vm646, %v1440, %v1442
      %v1446 = vsel %vm646, %v1442, %v1444
      %1450 = vrot.lane.b32.xlu0 %v1422, 124
      %v1451 = vpop.permute.xlu0 %1450
      %1452 = vrot.lane.b32.xlu0 %v1423, 124
      %v1453 = vpop.permute.xlu0 %1452
      %1454 = vrot.lane.b32.xlu0 %v1424, 124
      %v1455 = vpop.permute.xlu0 %1454
      %v1456 = vsel %vm660, %v1451, %v1453
      %v1457 = vsel %vm660, %v1453, %v1455
      %s1458 = scalar_lea.vmem %s5, 32
      %v1459 = vld [vmem:[%s1458] sm:$0xff]
      %1463 = vrot.lane.b32.xlu0 %v1386, 64
      %v1464 = vpop.permute.xlu0 %1463
      %1465 = vrot.lane.b32.xlu0 %v1387, 64
      %v1466 = vpop.permute.xlu0 %1465
      %1467 = vrot.lane.b32.xlu0 %v1388, 64
      %v1468 = vpop.permute.xlu0 %1467
      %1469 = vrot.lane.b32.xlu0 %v1434, 64
      %v1470 = vpop.permute.xlu0 %1469
      %1471 = vrot.lane.b32.xlu0 %v1435, 64
      %v1472 = vpop.permute.xlu0 %1471
      %1473 = vrot.lane.b32.xlu0 %v1433, 64
      %v1474 = vpop.permute.xlu0 %1473
      %1475 = vrot.lane.b32.xlu0 %v633, 64
      %v1476 = vpop.permute.xlu0 %1475
      %1477 = vrot.lane.b32.xlu0 %v634, 64
      %v1478 = vpop.permute.xlu0 %1477
      %1479 = vrot.lane.b32.xlu0 %v631, 64
      %v1480 = vpop.permute.xlu0 %1479
      %1481 = vrot.lane.b32.xlu0 %v1445, 64
      %v1482 = vpop.permute.xlu0 %1481
      %1483 = vrot.lane.b32.xlu0 %v1446, 64
      %v1484 = vpop.permute.xlu0 %1483
      %1485 = vrot.lane.b32.xlu0 %v1444, 64
      %v1486 = vpop.permute.xlu0 %1485
      %1487 = vrot.lane.b32.xlu0 %v1456, 64
      %v1488 = vpop.permute.xlu0 %1487
      %1489 = vrot.lane.b32.xlu0 %v1457, 64
      %v1490 = vpop.permute.xlu0 %1489
      %1491 = vrot.lane.b32.xlu0 %v1455, 64
      %v1492 = vpop.permute.xlu0 %1491
      %v1493 = vsel %vm1381, %v1464, %v1466
      %v1494 = vsel %vm1381, %v1466, %v1468
      %v1495 = vsel %vm1381, %v1470, %v1472
      %v1496 = vsel %vm1381, %v1472, %v1474
      %v1497 = vsel %vm1381, %v1476, %v1478
      %v1498 = vsel %vm1381, %v1478, %v1480
      %v1499 = vsel %vm1381, %v1482, %v1484
      %v1500 = vsel %vm1381, %v1484, %v1486
      %v1501 = vsel %vm1381, %v1488, %v1490
      %v1502 = vsel %vm1381, %v1490, %v1492
      %v1514 = vsel %vm802, %v1459, 0
      %1516 = vmatprep.subr.mxu0 %v1494
      %1517 = vmatpush1.msra.mxu0 %v1493
      %1518 = vmatprep.subr.mxu0 %v1496
      %1519 = vmatpush1.msra.mxu0 %v1495
      %1520 = vmatprep.subr.mxu0 %v1498
      %1521 = vmatpush1.msra.mxu0 %v1497
      %1522 = vmatprep.subr.mxu0 %v1500
      %1523 = vmatpush1.msra.mxu0 %v1499
      %1524 = vmatprep.subr.mxu0 %v1502
      %1525 = vmatpush1.msra.mxu0 %v1501
      %1526 = vmatprep.subr.mxu0 0.0
      %1527 = vmatpush1.msra.mxu0 0.0
      %1528 = vmatprep.subr.mxu0 0.0
      %1529 = vmatpush1.msra.mxu0 0.0
      %1530 = vmatprep.subr.mxu0 0.0
      %1531 = vmatpush1.msra.mxu0 0.0
      %1532 = vmatprep.subr.mxu0 0.0
      %1533 = vmatpush1.msra.mxu0 0.0
      %1534 = vmatprep.subr.mxu0 0.0
      %1535 = vmatpush1.msra.mxu0 0.0
      %1536 = vmatprep.subr.mxu0 0.0
      %1537 = vmatpush1.msra.mxu0 0.0
      %1538 = vmatprep.subr.mxu0 0.0
      %1539 = vmatpush1.msra.mxu0 0.0
      %1540 = vmatprep.subr.mxu0 0.0
      %1541 = vmatpush1.msra.mxu0 0.0
      %1542 = vmatprep.subr.mxu0 0.0
      %1543 = vmatpush1.msra.mxu0 0.0
      %1544 = vmatprep.subr.mxu0 0.0
      %1545 = vmatpush1.msra.mxu0 0.0
      %1546 = vmatprep.subr.mxu0 0.0
      %1547 = vmatpush1.msra.mxu0 0.0
      %1548 = vmatprep.subr.mxu0 0.0
      %1549 = vmatpush1.msra.mxu0 0.0
      %1550 = vmatprep.subr.mxu0 0.0
      %1551 = vmatpush1.msra.mxu0 0.0
      %1552 = vmatprep.subr.mxu0 0.0
      %1553 = vmatpush1.msra.mxu0 0.0
      %1554 = vmatprep.subr.mxu0 0.0
      %1555 = vmatpush1.msra.mxu0 0.0
      %1556 = vmatprep.subr.mxu0 0.0
      %1557 = vmatpush1.msra.mxu0 0.0
      %1558 = vmatprep.subr.mxu0 0.0
      %1559 = vmatpush1.msra.mxu0 0.0
      %1560 = vmatprep.subr.mxu0 0.0
      %1561 = vmatpush1.msra.mxu0 0.0
      %1562 = vmatprep.subr.mxu0 0.0
      %1563 = vmatpush1.msra.mxu0 0.0
      %1564 = vmatprep.subr.mxu0 0.0
      %1565 = vmatpush1.msra.mxu0 0.0
      %1566 = vmatprep.subr.mxu0 0.0
      %1567 = vmatpush1.msra.mxu0 0.0
      %1568 = vmatprep.subr.mxu0 0.0
      %1569 = vmatpush1.msra.mxu0 0.0
      %1570 = vmatprep.subr.mxu0 0.0
      %1571 = vmatpush1.msra.mxu0 0.0
      %1572 = vmatprep.subr.mxu0 0.0
      %1573 = vmatpush1.msra.mxu0 0.0
      %1574 = vmatprep.subr.mxu0 0.0
      %1575 = vmatpush1.msra.mxu0 0.0
      %1576 = vmatprep.subr.mxu0 0.0
      %1577 = vmatpush1.msra.mxu0 0.0
      %1578 = vmatprep.subr.mxu0 0.0
      %1579 = vmatpush1.msra.mxu0 0.0
      %1580 = vmatprep.mubr.f32.mxu0 0.0
      %1581 = vmatmul.mubr.f32.gmra.mrb[0].mxu0 %v1514
      %v1582 = vpop.f32.mrb[0].mxu0
      %v1583 = vadd.f32 0.0, %v1582
      %v1584 = vpop.f32.mrb[0].mxu0
      %v1585 = vadd.f32 0.0, %v1584
      %1586 = vdwg.mxu0
      %v1587 = vadd.f32 %v1375, %v1583
      %v1588 = vadd.f32 %v1376, %v1585
      %v1589 = vld [vmem:[%s6] sm:$0xff]
      %1591 = vset.pattern.permute.xlu0 0
      %1592 = vperm.xlu0 %1591, %v1589
      %v1593 = vpop.permute.xlu0 %1592
      %v1595 = vadd.f32 %v1587, %v1593
      %v1596 = vadd.f32 %v1588, %v1593
      %v1597 = vld [vmem:[#allocation2] sm:$0xff]
      %v1598 = vld [vmem:[#allocation2 + $0x8] sm:$0xff]
      %v1599 = vmul.f32 %v1597, %v549
      %v1600 = vmul.f32 %v1598, %v553
      %v1601 = vld [vmem:[#allocation2 + $0x10] sm:$0xff]
      %1602 = vrot.lane.b32.xlu0 %v572, 2
      %v1603 = vpop.permute.xlu0 %1602
      %1604 = vrot.lane.b32.xlu0 %v576, 2
      %v1605 = vpop.permute.xlu0 %1604
      %vm1606 = vcmask 15360
      %v1607 = vsel %vm1606, %v1603, %v1605
      %v1611 = vmul.f32 %v1597, %v1603
      %v1612 = vmul.f32 %v1598, %v1607
      %v1613 = vmul.f32 %v1601, %v1605
      %1617 = vrot.lane.b32.xlu0 %v1597, 127
      %v1618 = vpop.permute.xlu0 %1617
      %1619 = vrot.lane.b32.xlu0 %v1598, 127
      %v1620 = vpop.permute.xlu0 %1619
      %1621 = vrot.lane.b32.xlu0 %v1601, 127
      %v1622 = vpop.permute.xlu0 %1621
      %v1623 = vsel %vm618, %v1618, %v1620
      %v1624 = vsel %vm618, %v1620, %v1622
      %1630 = vrot.lane.b32.xlu0 %v1611, 126
      %v1631 = vpop.permute.xlu0 %1630
      %1632 = vrot.lane.b32.xlu0 %v1612, 126
      %v1633 = vpop.permute.xlu0 %1632
      %1634 = vrot.lane.b32.xlu0 %v1613, 126
      %v1635 = vpop.permute.xlu0 %1634
      %v1636 = vsel %vm632, %v1631, %v1633
      %v1637 = vsel %vm632, %v1633, %v1635
      %v1640 = vld [vmem:[%s3] sm:$0xff]
      %1641 = vrot.lane.b32.xlu0 %v549, 16
      %v1642 = vpop.permute.xlu0 %1641
      %1643 = vrot.lane.b32.xlu0 %v553, 16
      %v1644 = vpop.permute.xlu0 %1643
      %v1645 = vsel %vm670, %v1642, %v1644
      %v1649 = vmul.f32 %v1597, %v1642
      %v1650 = vmul.f32 %v1598, %v1645
      %v1651 = vmul.f32 %v1601, %v1644
      %1652 = vrot.lane.b32.xlu0 %v572, 18
      %v1653 = vpop.permute.xlu0 %1652
      %1654 = vrot.lane.b32.xlu0 %v576, 18
      %v1655 = vpop.permute.xlu0 %1654
      %vm1656 = vcmask 146432
      %v1657 = vsel %vm1656, %v1653, %v1655
      %v1661 = vmul.f32 %v1597, %v1653
      %v1662 = vmul.f32 %v1598, %v1657
      %v1663 = vmul.f32 %v1601, %v1655
      %1667 = vrot.lane.b32.xlu0 %v1661, 126
      %v1668 = vpop.permute.xlu0 %1667
      %1669 = vrot.lane.b32.xlu0 %v1662, 126
      %v1670 = vpop.permute.xlu0 %1669
      %1671 = vrot.lane.b32.xlu0 %v1663, 126
      %v1672 = vpop.permute.xlu0 %1671
      %v1673 = vsel %vm632, %v1668, %v1670
      %v1674 = vsel %vm632, %v1670, %v1672
      %s1675 = scalar_lea.vmem %s3, 8
      %v1676 = vld [vmem:[%s1675] sm:$0xff]
      %1680 = vrot.lane.b32.xlu0 %v1649, 112
      %v1681 = vpop.permute.xlu0 %1680
      %1682 = vrot.lane.b32.xlu0 %v1650, 112
      %v1683 = vpop.permute.xlu0 %1682
      %1684 = vrot.lane.b32.xlu0 %v1651, 112
      %v1685 = vpop.permute.xlu0 %1684
      %1686 = vrot.lane.b32.xlu0 %v1623, 112
      %v1687 = vpop.permute.xlu0 %1686
      %1688 = vrot.lane.b32.xlu0 %v1624, 112
      %v1689 = vpop.permute.xlu0 %1688
      %1690 = vrot.lane.b32.xlu0 %v1622, 112
      %v1691 = vpop.permute.xlu0 %1690
      %1692 = vrot.lane.b32.xlu0 %v1673, 112
      %v1693 = vpop.permute.xlu0 %1692
      %1694 = vrot.lane.b32.xlu0 %v1674, 112
      %v1695 = vpop.permute.xlu0 %1694
      %1696 = vrot.lane.b32.xlu0 %v1672, 112
      %v1697 = vpop.permute.xlu0 %1696
      %v1698 = vsel %vm781, %v1681, %v1683
      %v1699 = vsel %vm781, %v1683, %v1685
      %v1700 = vsel %vm781, %v1687, %v1689
      %v1701 = vsel %vm781, %v1689, %v1691
      %v1702 = vsel %vm781, %v1693, %v1695
      %v1703 = vsel %vm781, %v1695, %v1697
      %vm1710 = vcmask 195584
      %v1712 = vsel %vm1710, %v1676, 0
      %1714 = vmatprep.subr.mxu0 %v1699
      %1715 = vmatpush1.msra.mxu0 %v1698
      %1716 = vmatprep.subr.mxu0 %v1701
      %1717 = vmatpush1.msra.mxu0 %v1700
      %1718 = vmatprep.subr.mxu0 %v1703
      %1719 = vmatpush1.msra.mxu0 %v1702
      %1720 = vmatprep.subr.mxu0 0.0
      %1721 = vmatpush1.msra.mxu0 0.0
      %1722 = vmatprep.subr.mxu0 0.0
      %1723 = vmatpush1.msra.mxu0 0.0
      %1724 = vmatprep.subr.mxu0 0.0
      %1725 = vmatpush1.msra.mxu0 0.0
      %1726 = vmatprep.subr.mxu0 0.0
      %1727 = vmatpush1.msra.mxu0 0.0
      %1728 = vmatprep.subr.mxu0 0.0
      %1729 = vmatpush1.msra.mxu0 0.0
      %1730 = vmatprep.subr.mxu0 0.0
      %1731 = vmatpush1.msra.mxu0 0.0
      %1732 = vmatprep.subr.mxu0 0.0
      %1733 = vmatpush1.msra.mxu0 0.0
      %1734 = vmatprep.subr.mxu0 0.0
      %1735 = vmatpush1.msra.mxu0 0.0
      %1736 = vmatprep.subr.mxu0 0.0
      %1737 = vmatpush1.msra.mxu0 0.0
      %1738 = vmatprep.subr.mxu0 0.0
      %1739 = vmatpush1.msra.mxu0 0.0
      %1740 = vmatprep.subr.mxu0 0.0
      %1741 = vmatpush1.msra.mxu0 0.0
      %1742 = vmatprep.subr.mxu0 0.0
      %1743 = vmatpush1.msra.mxu0 0.0
      %1744 = vmatprep.subr.mxu0 0.0
      %1745 = vmatpush1.msra.mxu0 0.0
      %1746 = vmatprep.subr.mxu0 0.0
      %1747 = vmatpush1.msra.mxu0 0.0
      %1748 = vmatprep.subr.mxu0 0.0
      %1749 = vmatpush1.msra.mxu0 0.0
      %1750 = vmatprep.subr.mxu0 0.0
      %1751 = vmatpush1.msra.mxu0 0.0
      %1752 = vmatprep.subr.mxu0 0.0
      %1753 = vmatpush1.msra.mxu0 0.0
      %1754 = vmatprep.subr.mxu0 0.0
      %1755 = vmatpush1.msra.mxu0 0.0
      %1756 = vmatprep.subr.mxu0 0.0
      %1757 = vmatpush1.msra.mxu0 0.0
      %1758 = vmatprep.subr.mxu0 0.0
      %1759 = vmatpush1.msra.mxu0 0.0
      %1760 = vmatprep.subr.mxu0 0.0
      %1761 = vmatpush1.msra.mxu0 0.0
      %1762 = vmatprep.subr.mxu0 0.0
      %1763 = vmatpush1.msra.mxu0 0.0
      %1764 = vmatprep.subr.mxu0 0.0
      %1765 = vmatpush1.msra.mxu0 0.0
      %1766 = vmatprep.subr.mxu0 0.0
      %1767 = vmatpush1.msra.mxu0 0.0
      %1768 = vmatprep.subr.mxu0 0.0
      %1769 = vmatpush1.msra.mxu0 0.0
      %1770 = vmatprep.subr.mxu0 0.0
      %1771 = vmatpush1.msra.mxu0 0.0
      %1772 = vmatprep.subr.mxu0 0.0
      %1773 = vmatpush1.msra.mxu0 0.0
      %1774 = vmatprep.subr.mxu0 0.0
      %1775 = vmatpush1.msra.mxu0 0.0
      %1776 = vmatprep.subr.mxu0 0.0
      %1777 = vmatpush1.msra.mxu0 0.0
      %1778 = vmatprep.mubr.f32.mxu0 0.0
      %1779 = vmatmul.mubr.f32.gmra.mrb[0].mxu0 %v1712
      %v1780 = vpop.f32.mrb[0].mxu0
      %v1781 = vadd.f32 0.0, %v1780
      %v1782 = vpop.f32.mrb[0].mxu0
      %v1783 = vadd.f32 0.0, %v1782
      %1784 = vdwg.mxu0
      %v1786 = vsel %vm1710, %v1640, 0
      %1788 = vmatprep.subr.mxu0 %v1600
      %1789 = vmatpush1.msra.mxu0 %v1599
      %1790 = vmatprep.subr.mxu0 %v1624
      %1791 = vmatpush1.msra.mxu0 %v1623
      %1792 = vmatprep.subr.mxu0 %v1637
      %1793 = vmatpush1.msra.mxu0 %v1636
      %1794 = vmatprep.subr.mxu0 0.0
      %1795 = vmatpush1.msra.mxu0 0.0
      %1796 = vmatprep.subr.mxu0 0.0
      %1797 = vmatpush1.msra.mxu0 0.0
      %1798 = vmatprep.subr.mxu0 0.0
      %1799 = vmatpush1.msra.mxu0 0.0
      %1800 = vmatprep.subr.mxu0 0.0
      %1801 = vmatpush1.msra.mxu0 0.0
      %1802 = vmatprep.subr.mxu0 0.0
      %1803 = vmatpush1.msra.mxu0 0.0
      %1804 = vmatprep.subr.mxu0 0.0
      %1805 = vmatpush1.msra.mxu0 0.0
      %1806 = vmatprep.subr.mxu0 0.0
      %1807 = vmatpush1.msra.mxu0 0.0
      %1808 = vmatprep.subr.mxu0 0.0
      %1809 = vmatpush1.msra.mxu0 0.0
      %1810 = vmatprep.subr.mxu0 0.0
      %1811 = vmatpush1.msra.mxu0 0.0
      %1812 = vmatprep.subr.mxu0 0.0
      %1813 = vmatpush1.msra.mxu0 0.0
      %1814 = vmatprep.subr.mxu0 0.0
      %1815 = vmatpush1.msra.mxu0 0.0
      %1816 = vmatprep.subr.mxu0 0.0
      %1817 = vmatpush1.msra.mxu0 0.0
      %1818 = vmatprep.subr.mxu0 0.0
      %1819 = vmatpush1.msra.mxu0 0.0
      %1820 = vmatprep.subr.mxu0 0.0
      %1821 = vmatpush1.msra.mxu0 0.0
      %1822 = vmatprep.subr.mxu0 0.0
      %1823 = vmatpush1.msra.mxu0 0.0
      %1824 = vmatprep.subr.mxu0 0.0
      %1825 = vmatpush1.msra.mxu0 0.0
      %1826 = vmatprep.subr.mxu0 0.0
      %1827 = vmatpush1.msra.mxu0 0.0
      %1828 = vmatprep.subr.mxu0 0.0
      %1829 = vmatpush1.msra.mxu0 0.0
      %1830 = vmatprep.subr.mxu0 0.0
      %1831 = vmatpush1.msra.mxu0 0.0
      %1832 = vmatprep.subr.mxu0 0.0
      %1833 = vmatpush1.msra.mxu0 0.0
      %1834 = vmatprep.subr.mxu0 0.0
      %1835 = vmatpush1.msra.mxu0 0.0
      %1836 = vmatprep.subr.mxu0 0.0
      %1837 = vmatpush1.msra.mxu0 0.0
      %1838 = vmatprep.subr.mxu0 0.0
      %1839 = vmatpush1.msra.mxu0 0.0
      %1840 = vmatprep.subr.mxu0 0.0
      %1841 = vmatpush1.msra.mxu0 0.0
      %1842 = vmatprep.subr.mxu0 0.0
      %1843 = vmatpush1.msra.mxu0 0.0
      %1844 = vmatprep.subr.mxu0 0.0
      %1845 = vmatpush1.msra.mxu0 0.0
      %1846 = vmatprep.subr.mxu0 0.0
      %1847 = vmatpush1.msra.mxu0 0.0
      %1848 = vmatprep.subr.mxu0 0.0
      %1849 = vmatpush1.msra.mxu0 0.0
      %1850 = vmatprep.subr.mxu0 0.0
      %1851 = vmatpush1.msra.mxu0 0.0
      %1852 = vmatprep.mubr.f32.mxu0 0.0
      %1853 = vmatmul.mubr.f32.gmra.mrb[0].mxu0 %v1786
      %v1854 = vpop.f32.mrb[0].mxu0
      %v1855 = vadd.f32 %v1781, %v1854
      %v1856 = vpop.f32.mrb[0].mxu0
      %v1857 = vadd.f32 %v1783, %v1856
      %1858 = vdwg.mxu0
      %1859 = vrot.lane.b32.xlu0 %v549, 32
      %v1860 = vpop.permute.xlu0 %1859
      %1861 = vrot.lane.b32.xlu0 %v553, 32
      %v1862 = vpop.permute.xlu0 %1861
      %v1863 = vsel %vm955, %v1860, %v1862
      %v1867 = vmul.f32 %v1597, %v1860
      %v1868 = vmul.f32 %v1598, %v1863
      %v1869 = vmul.f32 %v1601, %v1862
      %1870 = vrot.lane.b32.xlu0 %v572, 34
      %v1871 = vpop.permute.xlu0 %1870
      %1872 = vrot.lane.b32.xlu0 %v576, 34
      %v1873 = vpop.permute.xlu0 %1872
      %v1874 = vsel %vm496, %v1871, %v1873
      %v1878 = vmul.f32 %v1597, %v1871
      %v1879 = vmul.f32 %v1598, %v1874
      %v1880 = vmul.f32 %v1601, %v1873
      %1884 = vrot.lane.b32.xlu0 %v1878, 126
      %v1885 = vpop.permute.xlu0 %1884
      %1886 = vrot.lane.b32.xlu0 %v1879, 126
      %v1887 = vpop.permute.xlu0 %1886
      %1888 = vrot.lane.b32.xlu0 %v1880, 126
      %v1889 = vpop.permute.xlu0 %1888
      %v1890 = vsel %vm632, %v1885, %v1887
      %v1891 = vsel %vm632, %v1887, %v1889
      %s1892 = scalar_lea.vmem %s3, 16
      %v1893 = vld [vmem:[%s1892] sm:$0xff]
      %1897 = vrot.lane.b32.xlu0 %v1867, 96
      %v1898 = vpop.permute.xlu0 %1897
      %1899 = vrot.lane.b32.xlu0 %v1868, 96
      %v1900 = vpop.permute.xlu0 %1899
      %1901 = vrot.lane.b32.xlu0 %v1869, 96
      %v1902 = vpop.permute.xlu0 %1901
      %1903 = vrot.lane.b32.xlu0 %v1623, 96
      %v1904 = vpop.permute.xlu0 %1903
      %1905 = vrot.lane.b32.xlu0 %v1624, 96
      %v1906 = vpop.permute.xlu0 %1905
      %1907 = vrot.lane.b32.xlu0 %v1622, 96
      %v1908 = vpop.permute.xlu0 %1907
      %1909 = vrot.lane.b32.xlu0 %v1890, 96
      %v1910 = vpop.permute.xlu0 %1909
      %1911 = vrot.lane.b32.xlu0 %v1891, 96
      %v1912 = vpop.permute.xlu0 %1911
      %1913 = vrot.lane.b32.xlu0 %v1889, 96
      %v1914 = vpop.permute.xlu0 %1913
      %v1915 = vsel %vm1067, %v1898, %v1900
      %v1916 = vsel %vm1067, %v1900, %v1902
      %v1917 = vsel %vm1067, %v1904, %v1906
      %v1918 = vsel %vm1067, %v1906, %v1908
      %v1919 = vsel %vm1067, %v1910, %v1912
      %v1920 = vsel %vm1067, %v1912, %v1914
      %v1928 = vsel %vm1710, %v1893, 0
      %1930 = vmatprep.subr.mxu0 %v1916
      %1931 = vmatpush1.msra.mxu0 %v1915
      %1932 = vmatprep.subr.mxu0 %v1918
      %1933 = vmatpush1.msra.mxu0 %v1917
      %1934 = vmatprep.subr.mxu0 %v1920
      %1935 = vmatpush1.msra.mxu0 %v1919
      %1936 = vmatprep.subr.mxu0 0.0
      %1937 = vmatpush1.msra.mxu0 0.0
      %1938 = vmatprep.subr.mxu0 0.0
      %1939 = vmatpush1.msra.mxu0 0.0
      %1940 = vmatprep.subr.mxu0 0.0
      %1941 = vmatpush1.msra.mxu0 0.0
      %1942 = vmatprep.subr.mxu0 0.0
      %1943 = vmatpush1.msra.mxu0 0.0
      %1944 = vmatprep.subr.mxu0 0.0
      %1945 = vmatpush1.msra.mxu0 0.0
      %1946 = vmatprep.subr.mxu0 0.0
      %1947 = vmatpush1.msra.mxu0 0.0
      %1948 = vmatprep.subr.mxu0 0.0
      %1949 = vmatpush1.msra.mxu0 0.0
      %1950 = vmatprep.subr.mxu0 0.0
      %1951 = vmatpush1.msra.mxu0 0.0
      %1952 = vmatprep.subr.mxu0 0.0
      %1953 = vmatpush1.msra.mxu0 0.0
      %1954 = vmatprep.subr.mxu0 0.0
      %1955 = vmatpush1.msra.mxu0 0.0
      %1956 = vmatprep.subr.mxu0 0.0
      %1957 = vmatpush1.msra.mxu0 0.0
      %1958 = vmatprep.subr.mxu0 0.0
      %1959 = vmatpush1.msra.mxu0 0.0
      %1960 = vmatprep.subr.mxu0 0.0
      %1961 = vmatpush1.msra.mxu0 0.0
      %1962 = vmatprep.subr.mxu0 0.0
      %1963 = vmatpush1.msra.mxu0 0.0
      %1964 = vmatprep.subr.mxu0 0.0
      %1965 = vmatpush1.msra.mxu0 0.0
      %1966 = vmatprep.subr.mxu0 0.0
      %1967 = vmatpush1.msra.mxu0 0.0
      %1968 = vmatprep.subr.mxu0 0.0
      %1969 = vmatpush1.msra.mxu0 0.0
      %1970 = vmatprep.subr.mxu0 0.0
      %1971 = vmatpush1.msra.mxu0 0.0
      %1972 = vmatprep.subr.mxu0 0.0
      %1973 = vmatpush1.msra.mxu0 0.0
      %1974 = vmatprep.subr.mxu0 0.0
      %1975 = vmatpush1.msra.mxu0 0.0
      %1976 = vmatprep.subr.mxu0 0.0
      %1977 = vmatpush1.msra.mxu0 0.0
      %1978 = vmatprep.subr.mxu0 0.0
      %1979 = vmatpush1.msra.mxu0 0.0
      %1980 = vmatprep.subr.mxu0 0.0
      %1981 = vmatpush1.msra.mxu0 0.0
      %1982 = vmatprep.subr.mxu0 0.0
      %1983 = vmatpush1.msra.mxu0 0.0
      %1984 = vmatprep.subr.mxu0 0.0
      %1985 = vmatpush1.msra.mxu0 0.0
      %1986 = vmatprep.subr.mxu0 0.0
      %1987 = vmatpush1.msra.mxu0 0.0
      %1988 = vmatprep.subr.mxu0 0.0
      %1989 = vmatpush1.msra.mxu0 0.0
      %1990 = vmatprep.subr.mxu0 0.0
      %1991 = vmatpush1.msra.mxu0 0.0
      %1992 = vmatprep.subr.mxu0 0.0
      %1993 = vmatpush1.msra.mxu0 0.0
      %1994 = vmatprep.mubr.f32.mxu0 0.0
      %1995 = vmatmul.mubr.f32.gmra.mrb[0].mxu0 %v1928
      %v1996 = vpop.f32.mrb[0].mxu0
      %v1997 = vadd.f32 0.0, %v1996
      %v1998 = vpop.f32.mrb[0].mxu0
      %v1999 = vadd.f32 0.0, %v1998
      %2000 = vdwg.mxu0
      %v2001 = vadd.f32 %v1855, %v1997
      %v2002 = vadd.f32 %v1857, %v1999
      %v2003 = vld [vmem:[%s4] sm:$0xff]
      %2005 = vset.pattern.permute.xlu0 0
      %2006 = vperm.xlu0 %2005, %v2003
      %v2007 = vpop.permute.xlu0 %2006
      %v2009 = vadd.f32 %v2001, %v2007
      %v2010 = vadd.f32 %v2002, %v2007
      %v2011 = vld [vmem:[#allocation4] sm:$0xff]
      %v2012 = vld [vmem:[#allocation4 + $0x8] sm:$0xff]
      %v2013 = vmul.f32 %v2011, %v549
      %v2014 = vmul.f32 %v2012, %v553
      %v2015 = vld [vmem:[#allocation4 + $0x10] sm:$0xff]
      %2019 = vrot.lane.b32.xlu0 %v2011, 127
      %v2020 = vpop.permute.xlu0 %2019
      %2021 = vrot.lane.b32.xlu0 %v2012, 127
      %v2022 = vpop.permute.xlu0 %2021
      %2023 = vrot.lane.b32.xlu0 %v2015, 127
      %v2024 = vpop.permute.xlu0 %2023
      %v2025 = vsel %vm618, %v2020, %v2022
      %v2026 = vsel %vm618, %v2022, %v2024
      %v2029 = vadd.f32 %v2013, %v2025
      %v2030 = vadd.f32 %v2014, %v2026
      %v2031 = vmul.f32 %v2011, %v1603
      %v2032 = vmul.f32 %v2012, %v1607
      %v2033 = vmul.f32 %v2015, %v1605
      %2037 = vrot.lane.b32.xlu0 %v2031, 126
      %v2038 = vpop.permute.xlu0 %2037
      %2039 = vrot.lane.b32.xlu0 %v2032, 126
      %v2040 = vpop.permute.xlu0 %2039
      %2041 = vrot.lane.b32.xlu0 %v2033, 126
      %v2042 = vpop.permute.xlu0 %2041
      %v2043 = vsel %vm632, %v2038, %v2040
      %v2044 = vsel %vm632, %v2040, %v2042
      %v2047 = vadd.f32 %v2029, %v2043
      %v2048 = vadd.f32 %v2030, %v2044
      %v2049 = vmul.f32 %v2011, %v1642
      %v2050 = vmul.f32 %v2012, %v1645
      %v2051 = vmul.f32 %v2015, %v1644
      %2055 = vrot.lane.b32.xlu0 %v2049, 112
      %v2056 = vpop.permute.xlu0 %2055
      %2057 = vrot.lane.b32.xlu0 %v2050, 112
      %v2058 = vpop.permute.xlu0 %2057
      %2059 = vrot.lane.b32.xlu0 %v2051, 112
      %v2060 = vpop.permute.xlu0 %2059
      %v2061 = vsel %vm781, %v2056, %v2058
      %v2062 = vsel %vm781, %v2058, %v2060
      %v2065 = vadd.f32 %v2047, %v2061
      %v2066 = vadd.f32 %v2048, %v2062
      %2067 = vrot.lane.b32.xlu0 %v2011, 111
      %v2068 = vpop.permute.xlu0 %2067
      %2069 = vrot.lane.b32.xlu0 %v2012, 111
      %v2070 = vpop.permute.xlu0 %2069
      %2071 = vrot.lane.b32.xlu0 %v2015, 111
      %v2072 = vpop.permute.xlu0 %2071
      %vm2073 = vcmask 908288
      %v2074 = vsel %vm2073, %v2068, %v2070
      %v2075 = vsel %vm2073, %v2070, %v2072
      %v2078 = vadd.f32 %v2065, %v2074
      %v2079 = vadd.f32 %v2066, %v2075
      %v2080 = vmul.f32 %v2011, %v1653
      %v2081 = vmul.f32 %v2012, %v1657
      %v2082 = vmul.f32 %v2015, %v1655
      %2086 = vrot.lane.b32.xlu0 %v2080, 110
      %v2087 = vpop.permute.xlu0 %2086
      %2088 = vrot.lane.b32.xlu0 %v2081, 110
      %v2089 = vpop.permute.xlu0 %2088
      %2090 = vrot.lane.b32.xlu0 %v2082, 110
      %v2091 = vpop.permute.xlu0 %2090
      %vm2092 = vcmask 900096
      %v2093 = vsel %vm2092, %v2087, %v2089
      %v2094 = vsel %vm2092, %v2089, %v2091
      %v2097 = vadd.f32 %v2078, %v2093
      %v2098 = vadd.f32 %v2079, %v2094
      %v2099 = vmul.f32 %v2011, %v1860
      %v2100 = vmul.f32 %v2012, %v1863
      %v2101 = vmul.f32 %v2015, %v1862
      %2105 = vrot.lane.b32.xlu0 %v2099, 96
      %v2106 = vpop.permute.xlu0 %2105
      %2107 = vrot.lane.b32.xlu0 %v2100, 96
      %v2108 = vpop.permute.xlu0 %2107
      %2109 = vrot.lane.b32.xlu0 %v2101, 96
      %v2110 = vpop.permute.xlu0 %2109
      %v2111 = vsel %vm1067, %v2106, %v2108
      %v2112 = vsel %vm1067, %v2108, %v2110
      %v2115 = vadd.f32 %v2097, %v2111
      %v2116 = vadd.f32 %v2098, %v2112
      %2117 = vrot.lane.b32.xlu0 %v2011, 95
      %v2118 = vpop.permute.xlu0 %2117
      %2119 = vrot.lane.b32.xlu0 %v2012, 95
      %v2120 = vpop.permute.xlu0 %2119
      %2121 = vrot.lane.b32.xlu0 %v2015, 95
      %v2122 = vpop.permute.xlu0 %2121
      %vm2123 = vcmask 777216
      %v2124 = vsel %vm2123, %v2118, %v2120
      %v2125 = vsel %vm2123, %v2120, %v2122
      %v2128 = vadd.f32 %v2115, %v2124
      %v2129 = vadd.f32 %v2116, %v2125
      %v2130 = vmul.f32 %v2011, %v1871
      %v2131 = vmul.f32 %v2012, %v1874
      %v2132 = vmul.f32 %v2015, %v1873
      %2136 = vrot.lane.b32.xlu0 %v2130, 94
      %v2137 = vpop.permute.xlu0 %2136
      %2138 = vrot.lane.b32.xlu0 %v2131, 94
      %v2139 = vpop.permute.xlu0 %2138
      %2140 = vrot.lane.b32.xlu0 %v2132, 94
      %v2141 = vpop.permute.xlu0 %2140
      %vm2142 = vcmask 769024
      %v2143 = vsel %vm2142, %v2137, %v2139
      %v2144 = vsel %vm2142, %v2139, %v2141
      %v2147 = vadd.f32 %v2128, %v2143
      %v2148 = vadd.f32 %v2129, %v2144
      %v2149 = vmul.f32 %v2147, 0.11111111
      %v2150 = vmul.f32 %v2148, 0.11111111
      %v2151 = vld [vmem:[%s7] sm:$0xff]
      %2153 = vset.pattern.permute.xlu0 0
      %2154 = vperm.xlu0 %2153, %v2151
      %v2155 = vpop.permute.xlu0 %2154
      %v2157 = vadd.f32 %v2149, %v2155
      %v2158 = vadd.f32 %v2150, %v2155
      %2159 = vst [vmem:[%s332] sm:$0xff] %v456
      %2160 = vst [vmem:[%s332 + $0x8] sm:$0xff] %v458
      %2161 = vst [vmem:[%s332 + $0x10] sm:$0xff] %v1595
      %2162 = vst [vmem:[%s332 + $0x18] sm:$0xff] %v1596
      %2163 = vst [vmem:[%s332 + $0x20] sm:$0xff] %v2009
      %2164 = vst [vmem:[%s332 + $0x28] sm:$0xff] %v2010
      %2165 = vst [vmem:[%s332 + $0x30] sm:$0xff] %v2157
      %2166 = vst [vmem:[%s332 + $0x38] sm:$0xff] %v2158
      %p2167 = scmp.lt.s32.totalorder %s20, 1
      %s2168 = scalar_select %p2167, %s20, 1
      %s2169 = smul.addr %s2168, 8
      %s2170 = smul.addr %s2169, 8
      %s2171 = scalar_lea.vmem %s9, %s2170
      // Predicated region
      $region57: #{inception_block.1} parent=55 // pred_check
        %p2172 = pneg %p232
      $region58: #{inception_block.1} parent=55 // pred_check_branch
        %2174 = sbr.rel (%p2172) target = $region60
      $region59: #{inception_block.1} parent=55 // pred_region
        _
      $region60: #{inception_block.1} parent=55 // pred_fallthru
        _
    $region56: #{inception_block.1} parent=5 // pred_fallthru
      _
    %p2175 = scmp.le.s32.totalorder 2, %s15
    // Predicated region
    $region61: #{inception_block.1} parent=5 // pred_check
      %p2176 = pneg %p2175
    $region62: #{inception_block.1} parent=5 // pred_check_branch
      %2178 = sbr.rel (%p2176) target = $region64
    $region63: #{inception_block.1} parent=5 // pred_region
      %s2179 = ssub.s32 %s15, 2
      // Predicated region
      $region65: #{inception_block.1} parent=63 // pred_check
        %p2180 = pneg %p238
      $region66: #{inception_block.1} parent=63 // pred_check_branch
        %2182 = sbr.rel (%p2180) target = $region68
      $region67: #{inception_block.1} parent=63 // pred_region
        %p2183 = scmp.lt.s32.totalorder %s21, 1
        %s2184 = scalar_select %p2183, %s21, 1
        %s2185 = smul.addr %s2184, 8
        %s2186 = smul.addr %s2185, 8
        %s2187 = scalar_lea.vmem %s9, %s2186
      $region68: #{inception_block.1} parent=63 // pred_fallthru
        _
    $region64: #{inception_block.1} parent=5 // pred_fallthru
      _
  $region6: #{inception_block.1} parent=0 // loop_footer
    %s19 = sadd.s32 1, %s15
  $region7: #{inception_block.1} parent=0 // loop_footer_branch
    %14 = sbr.rel target = $region3
  $region8: #{inception_block.1} parent=0 // loop_exit
    _

</llo_original>
